<compile_context>
chip_gen: v7x
topology: tpu7x:2x2x1
jax: 0.10.0
libtpu: 0.0.40
codegen_flags: <defaults>
</compile_context>

<pallas_src>
import jax
import jax.numpy as jnp
from jax.experimental import pallas as pl
from jax.experimental.pallas import tpu as pltpu


# ----------------------------------------------------------------------------
# Fused kernel: 3-NN interpolation folded into layer 0 + MLP stack
# ----------------------------------------------------------------------------
def _make_fused_kernel(num_layers, has_points1, s_is_one, k_nn):
    def kernel(*refs):
        refs, out_ref = refs[:-1], refs[-1]
        i = 0
        if not s_is_one:
            xyz1_ref = refs[i]; i += 1          # [1, C, TN]  f32
            xyz2_ref = refs[i]; i += 1          # [1, S, C]   f32
        if has_points1:
            p1_ref = refs[i]; i += 1            # [1, D1, TN] bf16
        p_ref = refs[i]; i += 1                 # [1, C0, S]  bf16 (= scale0*W0b @ points2)
        prm = refs[i:]

        tn = out_ref.shape[-1]

        # ---------- layer-0 contribution of the interpolated branch ----------
        if s_is_one:
            # PyTorch: points2.repeat(1, N, 1) -> after W0b this is a per-batch
            # bias, broadcast along the point axis.
            y_int = p_ref[0].astype(jnp.float32)                   # [C0, 1]
            if not has_points1:
                y_int = jnp.broadcast_to(y_int, (y_int.shape[0], tn))
        else:
            x1 = xyz1_ref[0]                                        # [C, TN]
            x2 = xyz2_ref[0]                                        # [S, C]
            c_dim, s_dim = x1.shape[0], x2.shape[0]
            # exact squared distances on the VPU (C is tiny), lanes = points
            d = jnp.zeros((s_dim, tn), jnp.float32)
            for c in range(c_dim):
                diff = x2[:, c:c + 1] - x1[c:c + 1, :]
                d = d + diff * diff

            iota_s = jax.lax.broadcasted_iota(jnp.int32, (s_dim, tn), 0)
            wgt = jnp.zeros((s_dim, tn), jnp.float32)
            norm = jnp.zeros((1, tn), jnp.float32)
            if s_dim >= 64:
                # Large-S path: pack (distance, index) into ONE monotonic
                # int32 key (d >= 0 so its f32 bit pattern is order-preserving;
                # index in the low bits -> smallest-index tie-break).  Halves
                # the XLU sublane reductions; the <=2^-19-relative distance
                # perturbation only affects near-exact ties.
                s_bits = max(1, (s_dim - 1).bit_length())
                lo_mask = jnp.int32((1 << s_bits) - 1)
                hi_mask = jnp.int32(~((1 << s_bits) - 1))
                int_max = jnp.int32(2 ** 31 - 1)
                key = jnp.bitwise_or(
                    jnp.bitwise_and(pltpu.bitcast(d, jnp.int32), hi_mask),
                    iota_s)
                for _ in range(k_nn):
                    kmin = jnp.min(key, axis=0, keepdims=True)      # [1, TN]
                    idx = jnp.bitwise_and(kmin, lo_mask)
                    dmin = pltpu.bitcast(jnp.bitwise_and(kmin, hi_mask),
                                         jnp.float32)
                    onehot = iota_s == idx                          # [S, TN]
                    recip = 1.0 / (dmin + 1e-8)                     # exact
                    wgt = wgt + jnp.where(onehot, recip, 0.0)
                    norm = norm + recip
                    key = jnp.where(onehot, int_max, key)
            else:
                # Small-S path: exact min + argmin with smallest-index
                # tie-break -> identical selection to torch dists.sort()[:, :3].
                for _ in range(k_nn):
                    dmin = jnp.min(d, axis=0, keepdims=True)        # [1, TN]
                    cand = jnp.where(d <= dmin, iota_s, s_dim)
                    idx = jnp.min(cand, axis=0, keepdims=True)      # [1, TN]
                    onehot = iota_s == idx                          # [S, TN]
                    recip = 1.0 / (dmin + 1e-8)                     # exact
                    wgt = wgt + jnp.where(onehot, recip, 0.0)
                    norm = norm + recip
                    d = jnp.where(onehot, jnp.inf, d)
            wgt = wgt * (1.0 / norm)                                # normalize
            # gather fused with layer 0: [C0, S] @ [S, TN] (one MXU matmul)
            y_int = jnp.dot(p_ref[0], wgt.astype(jnp.bfloat16),
                            preferred_element_type=jnp.float32)

        # ---------- fused (1x1 Conv1d o BN(eval) o ReLU) stack ----------
        # BN scale is pre-folded into the weights; epilogue = shift + ReLU.
        j = 0
        if has_points1:
            w0a = prm[j][...]; j += 1                               # [C0, D1] bf16
            y = jnp.dot(w0a, p1_ref[0],
                        preferred_element_type=jnp.float32) + y_int
        else:
            y = y_int
        shift0 = prm[j][...]; j += 1                                # [C0, 1] f32
        y = jnp.maximum(y + shift0, 0.0)
        for _ in range(1, num_layers):
            w = prm[j][...]; shift = prm[j + 1][...]; j += 2
            y = jnp.dot(w, y.astype(jnp.bfloat16),
                        preferred_element_type=jnp.float32)
            y = jnp.maximum(y + shift, 0.0)
        out_ref[0] = y.astype(out_ref.dtype)

    return kernel


# ----------------------------------------------------------------------------
# Tile / VMEM budgeting helpers
# ----------------------------------------------------------------------------
def _round_up(n, m):
    return -(-n // m) * m


def _vmem_limit_bytes():
    """Per-generation VMEM budget: ~5/8 of physical VMEM, capped at 64 MiB
    (v7x: 64 MiB physical -> 40 MiB budget; v5e/v6e: 128 MiB -> 64 MiB)."""
    cap = None
    try:
        cap = getattr(pltpu.get_tpu_info(), "vmem_capacity_bytes", None)
    except Exception:
        cap = None
    if not cap:
        cap = 64 * 1024 * 1024                  # conservative (v7x)
    return int(min(cap * 5 // 8, 64 * 1024 * 1024))


def _choose_tile(n, per_point_bytes, fixed_bytes, vmem_budget):
    """Largest lane-dense (multiple-of-128) point tile <= 1024 that divides N
    (no wrapper pad / output slice); shrinks if the estimated per-step VMEM
    working set would blow the budget.  Falls back to full-N (small N) or
    1024 + tail padding."""
    tn = None
    for t in range(128, min(n, 1024) + 1, 128):
        if n % t == 0:
            tn = t
    if tn is None:
        tn = n if n <= 1024 else 1024
    while tn % 256 == 0 and fixed_bytes + tn * per_point_bytes > (vmem_budget * 3) // 4:
        tn //= 2
    n_pad = n if n % tn == 0 else _round_up(n, tn)
    return tn, n_pad


# ----------------------------------------------------------------------------
# Wrapper: layout plumbing, weight folding and pallas_call
# ----------------------------------------------------------------------------
def pointnet_fp_forward(xyz1, xyz2, points1, points2, params,
                        out_dtype=jnp.bfloat16):
    """xyz1 [B,C,N], xyz2 [B,C,S], points1 [B,D1,N] or None, points2 [B,D2,S]
    (PyTorch channel-first layout).  Returns [B, mlp[-1], N] in `out_dtype`.
    (PyTorch returns f32; values are already bf16-MXU quantized, so bf16 output
    only changes the storage dtype of the largest HBM write stream.)"""
    B, C, N = xyz1.shape
    S = xyz2.shape[-1]
    D2 = points2.shape[1]
    has_p1 = points1 is not None
    D1 = points1.shape[1] if has_p1 else 0
    s_is_one = S == 1
    num_layers = len(params)
    C0 = params[0][0].shape[0]
    cout = params[-1][0].shape[0]
    assert params[0][0].shape[1] == (D1 + D2 if has_p1 else D2)
    k_nn = min(3, S)                       # torch: dists.sort()[..., :3]
    out_itemsize = jnp.dtype(out_dtype).itemsize
    chan_max = max(w.shape[0] for (w, _, _) in params)

    # ---- tile / VMEM budgeting (per TPU generation) ----
    vmem_budget = _vmem_limit_bytes()
    per_point = 2 * chan_max * 4 + 2 * cout * out_itemsize    # activations + out block
    if has_p1:
        per_point += 2 * D1 * 2                               # points1 block (x2 buffered)
    if not s_is_one:
        per_point += 2 * C * 4 + 5 * S * 4                    # xyz1 block + [S,TN] temps
    fixed = sum(w.size * 2 + sh.size * 4 for (w, _, sh) in params)
    fixed += 2 * (C0 * S * 2 + (0 if s_is_one else S * C * 4))

    tn, n_pad = _choose_tile(N, per_point, fixed, vmem_budget)
    # keep >= 2 parallel grid steps so both v7x TensorCores get work
    if B * (n_pad // tn) < 2 and tn % 256 == 0:
        tn //= 2
        n_pad = N if N % tn == 0 else _round_up(N, tn)

    def pad_n(a):
        return a if n_pad == N else jnp.pad(a, ((0, 0), (0, 0), (0, n_pad - N)))

    # ---- fold BN(eval) scale into the conv weights (f32, then bf16) ----
    w0, sc0, sh0 = params[0]
    w0s = (w0 * sc0).astype(jnp.float32)
    # layer-0 "interpolated" branch pre-applied to points2 (tiny, per batch):
    # P[b] = (scale0 * W0[:, D1:]) @ points2[b]   ->  [B, C0, S]
    p_small = jnp.einsum("od,bds->bos", w0s[:, D1:],
                         points2.astype(jnp.float32),
                         precision=jax.lax.Precision.HIGHEST).astype(jnp.bfloat16)

    inputs, in_specs = [], []
    if not s_is_one:
        inputs.append(pad_n(xyz1).astype(jnp.float32))
        in_specs.append(pl.BlockSpec((1, C, tn), lambda b, t: (b, 0, t)))
        inputs.append(jnp.transpose(xyz2, (0, 2, 1)).astype(jnp.float32))  # tiny
        in_specs.append(pl.BlockSpec((1, S, C), lambda b, t: (b, 0, 0)))
    if has_p1:
        inputs.append(pad_n(points1).astype(jnp.bfloat16))
        in_specs.append(pl.BlockSpec((1, D1, tn), lambda b, t: (b, 0, t)))
    inputs.append(p_small)
    in_specs.append(pl.BlockSpec((1, C0, S), lambda b, t: (b, 0, 0)))

    flat = []
    if has_p1:
        flat.append(w0s[:, :D1].astype(jnp.bfloat16))
    flat.append(sh0.astype(jnp.float32))
    for (w, sc, sh) in params[1:]:
        flat.append((w * sc).astype(jnp.bfloat16))
        flat.append(sh.astype(jnp.float32))
    for p in flat:
        inputs.append(p)
        in_specs.append(pl.BlockSpec(p.shape, lambda b, t: (0, 0)))

    grid = (B, n_pad // tn)

    per_pt_flops = sum(2 * w.shape[0] * w.shape[1] for (w, _, _) in params[1:])
    if has_p1:
        per_pt_flops += 2 * C0 * D1
    if not s_is_one:
        per_pt_flops += 2 * C0 * S + 8 * C * S
    cost = pl.CostEstimate(
        flops=int(B * n_pad * per_pt_flops),
        transcendentals=0 if s_is_one else int((k_nn + 1) * B * n_pad),
        bytes_accessed=int(sum(x.size * x.dtype.itemsize for x in inputs)
                           + B * cout * n_pad * out_itemsize))

    out = pl.pallas_call(
        _make_fused_kernel(num_layers, has_p1, s_is_one, k_nn),
        out_shape=jax.ShapeDtypeStruct((B, cout, n_pad), out_dtype),
        grid=grid,
        in_specs=in_specs,
        out_specs=pl.BlockSpec((1, cout, tn), lambda b, t: (b, 0, t)),
        compiler_params=pltpu.CompilerParams(
            dimension_semantics=("parallel", "parallel"),
            vmem_limit_bytes=vmem_budget),
        cost_estimate=cost,
    )(*inputs)
    return out if n_pad == N else out[:, :, :N]


# ----------------------------------------------------------------------------
# Module wrapper (parameter setup mirroring the PyTorch module in eval())
# ----------------------------------------------------------------------------
class PointNetFeaturePropagation:
    def __init__(self, in_channel, mlp, key, out_dtype=jnp.bfloat16):
        self.params = []
        self.out_dtype = out_dtype
        last, eps = in_channel, 1e-5
        for out_c in mlp:
            k1, k2, k3, k4, key = jax.random.split(key, 5)
            # nn.Conv1d(last, out_c, 1): weight [out_c, last], bias [out_c]
            w = jax.random.normal(k1, (out_c, last), jnp.float32) * 0.1
            b = jax.random.normal(k2, (out_c,), jnp.float32) * 0.1
            # nn.BatchNorm1d(out_c) in eval(): fold running stats into affine
            gamma = 1.0 + 0.1 * jax.random.normal(k3, (out_c,), jnp.float32)
            beta = 0.1 * jax.random.normal(k4, (out_c,), jnp.float32)
            running_mean = jnp.zeros((out_c,), jnp.float32)
            running_var = jnp.ones((out_c,), jnp.float32)
            inv_std = gamma / jnp.sqrt(running_var + eps)
            scale = inv_std.reshape(out_c, 1)
            shift = ((b - running_mean) * inv_std + beta).reshape(out_c, 1)
            self.params.append((w, scale, shift))
            last = out_c

    def __call__(self, xyz1, xyz2, points1, points2):
        return pointnet_fp_forward(xyz1, xyz2, points1, points2, self.params,
                                   out_dtype=self.out_dtype)


# ----------------------------------------------------------------------------
# Pure-JAX reference (mirrors the PyTorch forward) for validation
# ----------------------------------------------------------------------------
def reference_forward(xyz1, xyz2, points1, points2, params):
    xyz1_t = jnp.transpose(xyz1, (0, 2, 1))
    xyz2_t = jnp.transpose(xyz2, (0, 2, 1))
    p2_t = jnp.transpose(points2, (0, 2, 1))
    B, N, _ = xyz1_t.shape
    S = xyz2_t.shape[1]
    if S == 1:
        interp = jnp.tile(p2_t, (1, N, 1))
    else:
        d = jnp.sum((xyz1_t[:, :, None, :] - xyz2_t[:, None, :, :]) ** 2, -1)
        k = min(3, S)
        neg_d, idx = jax.lax.top_k(-d, k)
        recip = 1.0 / (-neg_d + 1e-8)
        weight = recip / jnp.sum(recip, axis=2, keepdims=True)
        gathered = jax.vmap(lambda pts, ii: pts[ii])(p2_t, idx)    # [B,N,k,D2]
        interp = jnp.sum(gathered * weight[..., None], axis=2)
    x = interp if points1 is None else jnp.concatenate(
        [jnp.transpose(points1, (0, 2, 1)), interp], axis=-1)
    for (w, scale, shift) in params:
        x = jnp.einsum("bnc,oc->bno", x, w,
                       precision=jax.lax.Precision.HIGHEST)
        x = jnp.maximum(x * scale[:, 0] + shift[:, 0], 0.0)
    return jnp.transpose(x, (0, 2, 1))


if __name__ == "__main__":
    key = jax.random.PRNGKey(0)
    B, C, N, S, D1, D2 = 2, 3, 512, 16, 16, 32
    mlp_channels = [64, 32]

    k1, k2, k3, k4, kp = jax.random.split(key, 5)
    xyz1 = jax.random.normal(k1, (B, C, N), jnp.float32)
    xyz2 = jax.random.normal(k2, (B, C, S), jnp.float32)
    points1 = jax.random.normal(k3, (B, D1, N), jnp.float32)
    points2 = jax.random.normal(k4, (B, D2, S), jnp.float32)

    fp = PointNetFeaturePropagation(in_channel=D1 + D2, mlp=mlp_channels, key=kp)
    out = jax.jit(fp.__call__)(xyz1, xyz2, points1, points2)
    jax.block_until_ready(out)

    assert out.shape == (B, mlp_channels[-1], N), out.shape
    assert out.dtype == jnp.bfloat16, out.dtype
    out_f32 = out.astype(jnp.float32)
    assert bool(jnp.all(jnp.isfinite(out_f32)))
    ref = reference_forward(xyz1, xyz2, points1, points2, fp.params)
    # bf16 MXU matmuls + bf16 output storage vs f32 reference
    assert bool(jnp.allclose(out_f32, ref, rtol=4e-2, atol=4e-2)), \
        float(jnp.max(jnp.abs(out_f32 - ref)))
    print("KERNEL_OK")
</pallas_src>

<mosaic_0001>
module attributes {stable_mosaic.version = 11 : i64} {
  func.func @kernel(%arg0: i32, %arg1: i32, %arg2: memref<1x3x512xf32, #tpu.memory_space<vmem>>, %arg3: memref<1x16x3xf32, #tpu.memory_space<vmem>>, %arg4: memref<1x16x512xbf16, #tpu.memory_space<vmem>>, %arg5: memref<1x64x16xbf16, #tpu.memory_space<vmem>>, %arg6: memref<64x16xbf16, #tpu.memory_space<vmem>>, %arg7: memref<64x1xf32, #tpu.memory_space<vmem>>, %arg8: memref<32x64xbf16, #tpu.memory_space<vmem>>, %arg9: memref<32x1xf32, #tpu.memory_space<vmem>>, %arg10: memref<1x32x512xbf16, #tpu.memory_space<vmem>>) attributes {dimension_semantics = [#tpu.dimension_semantics<parallel>, #tpu.dimension_semantics<parallel>], iteration_bounds = array<i64: 2, 1>, scalar_prefetch = 0 : i64, scratch_operands = 0 : i64, tpu.core_type = #tpu.core_type<tc>, window_params = [{transform_indices = @transform_0, window_bounds = array<i64: 1, 3, 512>}, {transform_indices = @transform_1, window_bounds = array<i64: 1, 16, 3>}, {transform_indices = @transform_2, window_bounds = array<i64: 1, 16, 512>}, {transform_indices = @transform_3, window_bounds = array<i64: 1, 64, 16>}, {pipeline_mode = #tpu.pipeline_mode<synchronous>, transform_indices = @transform_4, window_bounds = array<i64: 64, 16>}, {pipeline_mode = #tpu.pipeline_mode<synchronous>, transform_indices = @transform_5, window_bounds = array<i64: 64, 1>}, {pipeline_mode = #tpu.pipeline_mode<synchronous>, transform_indices = @transform_6, window_bounds = array<i64: 32, 64>}, {pipeline_mode = #tpu.pipeline_mode<synchronous>, transform_indices = @transform_7, window_bounds = array<i64: 32, 1>}, {transform_indices = @transform_8, window_bounds = array<i64: 1, 32, 512>}]} {
    %c0 = arith.constant 0 : index
    %c0_0 = arith.constant 0 : index
    %c0_1 = arith.constant 0 : index
    %0 = vector.load %arg2[%c0, %c0_0, %c0_1] : memref<1x3x512xf32, #tpu.memory_space<vmem>>, vector<1x3x512xf32>
    %1 = vector.shape_cast %0 : vector<1x3x512xf32> to vector<3x512xf32>
    %c0_2 = arith.constant 0 : index
    %c0_3 = arith.constant 0 : index
    %c0_4 = arith.constant 0 : index
    %2 = vector.load %arg3[%c0_2, %c0_3, %c0_4] : memref<1x16x3xf32, #tpu.memory_space<vmem>>, vector<1x16x3xf32>
    %3 = vector.shape_cast %2 : vector<1x16x3xf32> to vector<16x3xf32>
    %cst = arith.constant 0.000000e+00 : f32
    %4 = vector.broadcast %cst : f32 to vector<16x512xf32>
    %5 = vector.extract_strided_slice %3 {offsets = [0, 0], sizes = [16, 1], strides = [1, 1]} : vector<16x3xf32> to vector<16x1xf32>
    %6 = vector.extract_strided_slice %1 {offsets = [0, 0], sizes = [1, 512], strides = [1, 1]} : vector<3x512xf32> to vector<1x512xf32>
    %7 = vector.broadcast %5 : vector<16x1xf32> to vector<16x512xf32>
    %8 = vector.broadcast %6 : vector<1x512xf32> to vector<16x512xf32>
    %9 = arith.subf %7, %8 : vector<16x512xf32>
    %10 = arith.mulf %9, %9 : vector<16x512xf32>
    %11 = arith.addf %4, %10 : vector<16x512xf32>
    %12 = vector.extract_strided_slice %3 {offsets = [0, 1], sizes = [16, 1], strides = [1, 1]} : vector<16x3xf32> to vector<16x1xf32>
    %13 = vector.extract_strided_slice %1 {offsets = [1, 0], sizes = [1, 512], strides = [1, 1]} : vector<3x512xf32> to vector<1x512xf32>
    %14 = vector.broadcast %12 : vector<16x1xf32> to vector<16x512xf32>
    %15 = vector.broadcast %13 : vector<1x512xf32> to vector<16x512xf32>
    %16 = arith.subf %14, %15 : vector<16x512xf32>
    %17 = arith.mulf %16, %16 : vector<16x512xf32>
    %18 = arith.addf %11, %17 : vector<16x512xf32>
    %19 = vector.extract_strided_slice %3 {offsets = [0, 2], sizes = [16, 1], strides = [1, 1]} : vector<16x3xf32> to vector<16x1xf32>
    %20 = vector.extract_strided_slice %1 {offsets = [2, 0], sizes = [1, 512], strides = [1, 1]} : vector<3x512xf32> to vector<1x512xf32>
    %21 = vector.broadcast %19 : vector<16x1xf32> to vector<16x512xf32>
    %22 = vector.broadcast %20 : vector<1x512xf32> to vector<16x512xf32>
    %23 = arith.subf %21, %22 : vector<16x512xf32>
    %24 = arith.mulf %23, %23 : vector<16x512xf32>
    %25 = arith.addf %18, %24 : vector<16x512xf32>
    %26 = tpu.iota {dimensions = array<i32: 0>} : vector<16x512xi32>
    %cst_5 = arith.constant 0.000000e+00 : f32
    %27 = vector.broadcast %cst_5 : f32 to vector<16x512xf32>
    %cst_6 = arith.constant 0.000000e+00 : f32
    %28 = vector.broadcast %cst_6 : f32 to vector<1x512xf32>
    %cst_7 = arith.constant dense<0x7F800000> : vector<512xf32>
    %29 = vector.multi_reduction <minimumf>, %25, %cst_7 [0] : vector<16x512xf32> to vector<512xf32>
    %30 = vector.shape_cast %29 : vector<512xf32> to vector<1x512xf32>
    %31 = vector.broadcast %30 : vector<1x512xf32> to vector<16x512xf32>
    %32 = arith.cmpf ole, %25, %31 : vector<16x512xf32>
    %c16_i32 = arith.constant 16 : i32
    %33 = vector.broadcast %c16_i32 : i32 to vector<16x512xi32>
    %34 = arith.select %32, %26, %33 : vector<16x512xi1>, vector<16x512xi32>
    %cst_8 = arith.constant dense<2147483647> : vector<512xi32>
    %35 = vector.multi_reduction <minsi>, %34, %cst_8 [0] : vector<16x512xi32> to vector<512xi32>
    %36 = vector.shape_cast %35 : vector<512xi32> to vector<1x512xi32>
    %37 = vector.broadcast %36 : vector<1x512xi32> to vector<16x512xi32>
    %38 = arith.cmpi eq, %26, %37 : vector<16x512xi32>
    %cst_9 = arith.constant 9.99999993E-9 : f32
    %39 = vector.broadcast %cst_9 : f32 to vector<1x512xf32>
    %40 = arith.addf %30, %39 : vector<1x512xf32>
    %cst_10 = arith.constant 1.000000e+00 : f32
    %41 = vector.broadcast %cst_10 : f32 to vector<1x512xf32>
    %42 = arith.divf %41, %40 : vector<1x512xf32>
    %cst_11 = arith.constant 0.000000e+00 : f32
    %43 = vector.shape_cast %42 : vector<1x512xf32> to vector<1x512xf32>
    %44 = vector.broadcast %43 : vector<1x512xf32> to vector<16x512xf32>
    %45 = vector.broadcast %cst_11 : f32 to vector<16x512xf32>
    %46 = arith.select %38, %44, %45 : vector<16x512xi1>, vector<16x512xf32>
    %47 = arith.addf %27, %46 : vector<16x512xf32>
    %48 = arith.addf %28, %42 : vector<1x512xf32>
    %cst_12 = arith.constant 0x7F800000 : f32
    %49 = vector.broadcast %cst_12 : f32 to vector<16x512xf32>
    %50 = arith.select %38, %49, %25 : vector<16x512xi1>, vector<16x512xf32>
    %cst_13 = arith.constant dense<0x7F800000> : vector<512xf32>
    %51 = vector.multi_reduction <minimumf>, %50, %cst_13 [0] : vector<16x512xf32> to vector<512xf32>
    %52 = vector.shape_cast %51 : vector<512xf32> to vector<1x512xf32>
    %53 = vector.broadcast %52 : vector<1x512xf32> to vector<16x512xf32>
    %54 = arith.cmpf ole, %50, %53 : vector<16x512xf32>
    %c16_i32_14 = arith.constant 16 : i32
    %55 = vector.broadcast %c16_i32_14 : i32 to vector<16x512xi32>
    %56 = arith.select %54, %26, %55 : vector<16x512xi1>, vector<16x512xi32>
    %cst_15 = arith.constant dense<2147483647> : vector<512xi32>
    %57 = vector.multi_reduction <minsi>, %56, %cst_15 [0] : vector<16x512xi32> to vector<512xi32>
    %58 = vector.shape_cast %57 : vector<512xi32> to vector<1x512xi32>
    %59 = vector.broadcast %58 : vector<1x512xi32> to vector<16x512xi32>
    %60 = arith.cmpi eq, %26, %59 : vector<16x512xi32>
    %cst_16 = arith.constant 9.99999993E-9 : f32
    %61 = vector.broadcast %cst_16 : f32 to vector<1x512xf32>
    %62 = arith.addf %52, %61 : vector<1x512xf32>
    %cst_17 = arith.constant 1.000000e+00 : f32
    %63 = vector.broadcast %cst_17 : f32 to vector<1x512xf32>
    %64 = arith.divf %63, %62 : vector<1x512xf32>
    %cst_18 = arith.constant 0.000000e+00 : f32
    %65 = vector.shape_cast %64 : vector<1x512xf32> to vector<1x512xf32>
    %66 = vector.broadcast %65 : vector<1x512xf32> to vector<16x512xf32>
    %67 = vector.broadcast %cst_18 : f32 to vector<16x512xf32>
    %68 = arith.select %60, %66, %67 : vector<16x512xi1>, vector<16x512xf32>
    %69 = arith.addf %47, %68 : vector<16x512xf32>
    %70 = arith.addf %48, %64 : vector<1x512xf32>
    %cst_19 = arith.constant 0x7F800000 : f32
    %71 = vector.broadcast %cst_19 : f32 to vector<16x512xf32>
    %72 = arith.select %60, %71, %50 : vector<16x512xi1>, vector<16x512xf32>
    %cst_20 = arith.constant dense<0x7F800000> : vector<512xf32>
    %73 = vector.multi_reduction <minimumf>, %72, %cst_20 [0] : vector<16x512xf32> to vector<512xf32>
    %74 = vector.shape_cast %73 : vector<512xf32> to vector<1x512xf32>
    %75 = vector.broadcast %74 : vector<1x512xf32> to vector<16x512xf32>
    %76 = arith.cmpf ole, %72, %75 : vector<16x512xf32>
    %c16_i32_21 = arith.constant 16 : i32
    %77 = vector.broadcast %c16_i32_21 : i32 to vector<16x512xi32>
    %78 = arith.select %76, %26, %77 : vector<16x512xi1>, vector<16x512xi32>
    %cst_22 = arith.constant dense<2147483647> : vector<512xi32>
    %79 = vector.multi_reduction <minsi>, %78, %cst_22 [0] : vector<16x512xi32> to vector<512xi32>
    %80 = vector.shape_cast %79 : vector<512xi32> to vector<1x512xi32>
    %81 = vector.broadcast %80 : vector<1x512xi32> to vector<16x512xi32>
    %82 = arith.cmpi eq, %26, %81 : vector<16x512xi32>
    %cst_23 = arith.constant 9.99999993E-9 : f32
    %83 = vector.broadcast %cst_23 : f32 to vector<1x512xf32>
    %84 = arith.addf %74, %83 : vector<1x512xf32>
    %cst_24 = arith.constant 1.000000e+00 : f32
    %85 = vector.broadcast %cst_24 : f32 to vector<1x512xf32>
    %86 = arith.divf %85, %84 : vector<1x512xf32>
    %cst_25 = arith.constant 0.000000e+00 : f32
    %87 = vector.shape_cast %86 : vector<1x512xf32> to vector<1x512xf32>
    %88 = vector.broadcast %87 : vector<1x512xf32> to vector<16x512xf32>
    %89 = vector.broadcast %cst_25 : f32 to vector<16x512xf32>
    %90 = arith.select %82, %88, %89 : vector<16x512xi1>, vector<16x512xf32>
    %91 = arith.addf %69, %90 : vector<16x512xf32>
    %92 = arith.addf %70, %86 : vector<1x512xf32>
    %cst_26 = arith.constant 1.000000e+00 : f32
    %93 = vector.broadcast %cst_26 : f32 to vector<1x512xf32>
    %94 = arith.divf %93, %92 : vector<1x512xf32>
    %95 = vector.broadcast %94 : vector<1x512xf32> to vector<16x512xf32>
    %96 = arith.mulf %91, %95 : vector<16x512xf32>
    %c0_27 = arith.constant 0 : index
    %c0_28 = arith.constant 0 : index
    %c0_29 = arith.constant 0 : index
    %97 = vector.load %arg5[%c0_27, %c0_28, %c0_29] : memref<1x64x16xbf16, #tpu.memory_space<vmem>>, vector<1x64x16xbf16>
    %98 = vector.shape_cast %97 : vector<1x64x16xbf16> to vector<64x16xbf16>
    %99 = arith.truncf %96 : vector<16x512xf32> to vector<16x512xbf16>
    %cst_30 = arith.constant dense<0.000000e+00> : vector<64x512xf32>
    %100 = tpu.matmul %98, %99, %cst_30 {dimension_numbers = #tpu.dot_dimension_numbers<[1], [0], [0], [1], [0, 0, 1, 1], [], []>} : vector<64x16xbf16>, vector<16x512xbf16>, vector<64x512xf32> -> vector<64x512xf32>
    %c0_31 = arith.constant 0 : index
    %c0_32 = arith.constant 0 : index
    %101 = vector.load %arg6[%c0_31, %c0_32] : memref<64x16xbf16, #tpu.memory_space<vmem>>, vector<64x16xbf16>
    %c0_33 = arith.constant 0 : index
    %c0_34 = arith.constant 0 : index
    %c0_35 = arith.constant 0 : index
    %102 = vector.load %arg4[%c0_33, %c0_34, %c0_35] : memref<1x16x512xbf16, #tpu.memory_space<vmem>>, vector<1x16x512xbf16>
    %103 = vector.shape_cast %102 : vector<1x16x512xbf16> to vector<16x512xbf16>
    %cst_36 = arith.constant dense<0.000000e+00> : vector<64x512xf32>
    %104 = tpu.matmul %101, %103, %cst_36 {dimension_numbers = #tpu.dot_dimension_numbers<[1], [0], [0], [1], [0, 0, 1, 1], [], []>} : vector<64x16xbf16>, vector<16x512xbf16>, vector<64x512xf32> -> vector<64x512xf32>
    %105 = arith.addf %104, %100 : vector<64x512xf32>
    %c0_37 = arith.constant 0 : index
    %c0_38 = arith.constant 0 : index
    %106 = vector.load %arg7[%c0_37, %c0_38] : memref<64x1xf32, #tpu.memory_space<vmem>>, vector<64x1xf32>
    %107 = vector.broadcast %106 : vector<64x1xf32> to vector<64x512xf32>
    %108 = arith.addf %105, %107 : vector<64x512xf32>
    %cst_39 = arith.constant 0.000000e+00 : f32
    %109 = vector.broadcast %cst_39 : f32 to vector<64x512xf32>
    %110 = arith.maximumf %108, %109 : vector<64x512xf32>
    %c0_40 = arith.constant 0 : index
    %c0_41 = arith.constant 0 : index
    %111 = vector.load %arg8[%c0_40, %c0_41] : memref<32x64xbf16, #tpu.memory_space<vmem>>, vector<32x64xbf16>
    %c0_42 = arith.constant 0 : index
    %c0_43 = arith.constant 0 : index
    %112 = vector.load %arg9[%c0_42, %c0_43] : memref<32x1xf32, #tpu.memory_space<vmem>>, vector<32x1xf32>
    %113 = arith.truncf %110 : vector<64x512xf32> to vector<64x512xbf16>
    %cst_44 = arith.constant dense<0.000000e+00> : vector<32x512xf32>
    %114 = tpu.matmul %111, %113, %cst_44 {dimension_numbers = #tpu.dot_dimension_numbers<[1], [0], [0], [1], [0, 0, 1, 1], [], []>} : vector<32x64xbf16>, vector<64x512xbf16>, vector<32x512xf32> -> vector<32x512xf32>
    %115 = vector.broadcast %112 : vector<32x1xf32> to vector<32x512xf32>
    %116 = arith.addf %114, %115 : vector<32x512xf32>
    %cst_45 = arith.constant 0.000000e+00 : f32
    %117 = vector.broadcast %cst_45 : f32 to vector<32x512xf32>
    %118 = arith.maximumf %116, %117 : vector<32x512xf32>
    %119 = arith.truncf %118 : vector<32x512xf32> to vector<32x512xbf16>
    %c0_46 = arith.constant 0 : index
    %c0_47 = arith.constant 0 : index
    %c0_48 = arith.constant 0 : index
    %120 = vector.load %arg10[%c0_46, %c0_47, %c0_48] : memref<1x32x512xbf16, #tpu.memory_space<vmem>>, vector<1x32x512xbf16>
    %121 = vector.shape_cast %120 : vector<1x32x512xbf16> to vector<32x512xbf16>
    %122 = vector.shape_cast %119 : vector<32x512xbf16> to vector<1x32x512xbf16>
    tpu.vector_store %arg10[%c0_46, %c0_47, %c0_48], %122 {strides = array<i32>} : memref<1x32x512xbf16, #tpu.memory_space<vmem>>, vector<1x32x512xbf16>,
    return
  }
  func.func @transform_0(%arg0: i32, %arg1: i32) -> (i32, i32, i32) {
    %c0_i32 = arith.constant 0 : i32
    %c0_i32_0 = arith.constant 0 : i32
    return %arg0, %c0_i32, %arg1 : i32, i32, i32
  }
  func.func @transform_1(%arg0: i32, %arg1: i32) -> (i32, i32, i32) {
    %c0_i32 = arith.constant 0 : i32
    %c0_i32_0 = arith.constant 0 : i32
    %c0_i32_1 = arith.constant 0 : i32
    return %arg0, %c0_i32, %c0_i32_0 : i32, i32, i32
  }
  func.func @transform_2(%arg0: i32, %arg1: i32) -> (i32, i32, i32) {
    %c0_i32 = arith.constant 0 : i32
    %c0_i32_0 = arith.constant 0 : i32
    return %arg0, %c0_i32, %arg1 : i32, i32, i32
  }
  func.func @transform_3(%arg0: i32, %arg1: i32) -> (i32, i32, i32) {
    %c0_i32 = arith.constant 0 : i32
    %c0_i32_0 = arith.constant 0 : i32
    %c0_i32_1 = arith.constant 0 : i32
    return %arg0, %c0_i32, %c0_i32_0 : i32, i32, i32
  }
  func.func @transform_4(%arg0: i32, %arg1: i32) -> (i32, i32) {
    %c0_i32 = arith.constant 0 : i32
    %c0_i32_0 = arith.constant 0 : i32
    %c0_i32_1 = arith.constant 0 : i32
    return %c0_i32, %c0_i32_0 : i32, i32
  }
  func.func @transform_5(%arg0: i32, %arg1: i32) -> (i32, i32) {
    %c0_i32 = arith.constant 0 : i32
    %c0_i32_0 = arith.constant 0 : i32
    %c0_i32_1 = arith.constant 0 : i32
    return %c0_i32, %c0_i32_0 : i32, i32
  }
  func.func @transform_6(%arg0: i32, %arg1: i32) -> (i32, i32) {
    %c0_i32 = arith.constant 0 : i32
    %c0_i32_0 = arith.constant 0 : i32
    %c0_i32_1 = arith.constant 0 : i32
    return %c0_i32, %c0_i32_0 : i32, i32
  }
  func.func @transform_7(%arg0: i32, %arg1: i32) -> (i32, i32) {
    %c0_i32 = arith.constant 0 : i32
    %c0_i32_0 = arith.constant 0 : i32
    %c0_i32_1 = arith.constant 0 : i32
    return %c0_i32, %c0_i32_0 : i32, i32
  }
  func.func @transform_8(%arg0: i32, %arg1: i32) -> (i32, i32, i32) {
    %c0_i32 = arith.constant 0 : i32
    %c0_i32_0 = arith.constant 0 : i32
    return %arg0, %c0_i32, %arg1 : i32, i32, i32
  }
}

</mosaic_0001>

<llo_original>
// kernel: a_call__.1
$region0: #{a_call__.1}
  #allocation0 [shape = 'u32[]', space=smem, size = 0x4, offset = 0x4, fixed_abs, tag = 'smem constant byte address 0x4 - core index']
  #allocation1 [shape = 'u32[144,128]{1,0:T(1,128)}', space=vmem, size = 0x12000, scoped, tag = 'internal scratch']
  %s0 = inlined_call_operand.vmem [shape: f32[2,3,512], index: 0, kind: input, shape index: {}]
  %s1 = inlined_call_operand.vmem [shape: f32[2,16,3], index: 1, kind: input, shape index: {}]
  %s2 = inlined_call_operand.vmem [shape: bf16[2,16,512], index: 2, kind: input, shape index: {}]
  %s3 = inlined_call_operand.vmem [shape: bf16[2,64,16], index: 3, kind: input, shape index: {}]
  %s4 = inlined_call_operand.vmem [shape: bf16[64,16], index: 4, kind: input, shape index: {}]
  %s5 = inlined_call_operand.vmem [shape: f32[64,1], index: 5, kind: input, shape index: {}]
  %s6 = inlined_call_operand.vmem [shape: bf16[32,64], index: 6, kind: input, shape index: {}]
  %s7 = inlined_call_operand.vmem [shape: f32[32,1], index: 7, kind: input, shape index: {}]
  %s8 = inlined_call_operand.hbm [shape: bf16[2,32,512], index: 8, kind: output, shape index: {}]
  %s9 = sld [smem:[#allocation0]]
  $region65: #{a_call__.1} parent=0
    _
  %s11 = ssub.s32 1, %s9
  %s12 = scalar_select 0, %s11, %s9
  $region1: #{a_call__.1} parent=0
    #allocation2 [shape = 'u8[65536]{0}', space=vmem, size = 0x10000, scoped, tag = 'output window, operand 0']
    #allocation3 [shape = 's32[2]{0}', space=sflag, size = 0x8, scoped, tag = 'scoped memory for a_call__.1']
    %13 = vsyncpa [#allocation3], 0
    %s14 = scalar_lea.sflag [#allocation3], 1
    %15 = vsyncpa %s14, 0
    loop: start=0, step=1, limit=4
    $region2: #{a_call__.1} parent=1 // loop_pre_header
      _
    $region3: #{a_call__.1} parent=1 // loop_header
      %s17 = sphi 0, %s21
      %p18 = scmp.ge.s32.totalorder %s17, 4
      %s24 = sphi 0, %s36
      %s25 = sphi 0, %s32
      %s26 = sphi 0, %s24
      %s27 = sphi 0, %s25
      %s28 = sphi 0, %s26
      %s29 = sphi 0, %s27
      %s41 = sphi 0, %s43
      %s44 = sphi 0, %s41
      %s45 = sphi 0, %s44
      %s61 = sphi 0, %s45
      %s67 = sphi 0, %s69
      %s70 = sphi 0, %s67
      %s71 = sphi 0, %s70
      %s87 = sphi 0, %s71
      %s95 = sphi 0, %s97
      %s98 = sphi 0, %s95
      %s99 = sphi 0, %s98
      %s115 = sphi 0, %s99
      %s121 = sphi 0, %s123
      %s124 = sphi 0, %s121
      %s125 = sphi 0, %s124
      %s141 = sphi 0, %s125
      %s145 = sphi 0, %s145
      %s147 = sphi 0, %s145
      %s148 = sphi 0, %s147
      %s162 = sphi 0, %s148
      %s166 = sphi 0, %s166
      %s168 = sphi 0, %s166
      %s169 = sphi 0, %s168
      %s183 = sphi 0, %s169
      %s187 = sphi 0, %s187
      %s189 = sphi 0, %s187
      %s190 = sphi 0, %s189
      %s204 = sphi 0, %s190
      %s208 = sphi 0, %s208
      %s210 = sphi 0, %s208
      %s211 = sphi 0, %s210
      %s225 = sphi 0, %s211
      %s233 = sphi 0, %s235
      %s236 = sphi 0, %s233
      %s237 = sphi 0, %s236
      %s253 = sphi 0, %s237
    $region4: #{a_call__.1} parent=1 // loop_header_branch
      %20 = sbr.rel (%p18) target = $region8
    $region5: #{a_call__.1} parent=1 // loop_body
      %s22 = ssub.s32 %s17, 1
      %s23 = ssub.s32 %s17, 2
      %s30 = sadd.s32 1, %s25
      %p31 = scmp.ge.s32.totalorder %s30, 1
      %s32 = scalar_select %p31, 0, %s30
      %s33 = sadd.s32 1, %s24
      %s34 = scalar_select %p31, %s33, %s24
      %p35 = scmp.ge.s32.totalorder %s34, 2
      %s36 = scalar_select %p35, 0, %s34
      %s37 = ssub.s32 %s24, %s36
      %s38 = ssub.s32 %s25, %s32
      %s39 = sor.u32 %s37, %s38
      %p40 = scmp.eq.s32.totalorder %s39, 0
      %s42 = sadd.s32 %s41, 1
      %s43 = scalar_select %p40, %s41, %s42
      %p46 = pneg %p40
      %p47 = scmp.eq.s32.totalorder %s17, 1
      %p48 = por %p46, %p47
      %p49 = scmp.ne.s32.totalorder %s41, %s44
      %p50 = scmp.eq.s32.totalorder %s17, 0
      %p51 = por %p49, %p50
      %p52 = scmp.ne.s32.totalorder %s41, %s44
      %p53 = scmp.eq.s32.totalorder %s22, 1
      %p54 = por %p52, %p53
      %p55 = scmp.ne.s32.totalorder %s44, %s45
      %p56 = scmp.eq.s32.totalorder %s22, 0
      %p57 = por %p55, %p56
      %p58 = scmp.ne.s32.totalorder %s44, %s45
      %p59 = scmp.eq.s32.totalorder %s23, 1
      %p60 = por %p58, %p59
      %p62 = scmp.ne.s32.totalorder %s45, %s61
      %p63 = scmp.eq.s32.totalorder %s23, 0
      %p64 = por %p62, %p63
      %s65 = ssub.s32 %s24, %s36
      %p66 = scmp.eq.s32.totalorder %s65, 0
      %s68 = sadd.s32 %s67, 1
      %s69 = scalar_select %p66, %s67, %s68
      %p72 = pneg %p66
      %p73 = scmp.eq.s32.totalorder %s17, 1
      %p74 = por %p72, %p73
      %p75 = scmp.ne.s32.totalorder %s67, %s70
      %p76 = scmp.eq.s32.totalorder %s17, 0
      %p77 = por %p75, %p76
      %p78 = scmp.ne.s32.totalorder %s67, %s70
      %p79 = scmp.eq.s32.totalorder %s22, 1
      %p80 = por %p78, %p79
      %p81 = scmp.ne.s32.totalorder %s70, %s71
      %p82 = scmp.eq.s32.totalorder %s22, 0
      %p83 = por %p81, %p82
      %p84 = scmp.ne.s32.totalorder %s70, %s71
      %p85 = scmp.eq.s32.totalorder %s23, 1
      %p86 = por %p84, %p85
      %p88 = scmp.ne.s32.totalorder %s71, %s87
      %p89 = scmp.eq.s32.totalorder %s23, 0
      %p90 = por %p88, %p89
      %s91 = ssub.s32 %s24, %s36
      %s92 = ssub.s32 %s25, %s32
      %s93 = sor.u32 %s91, %s92
      %p94 = scmp.eq.s32.totalorder %s93, 0
      %s96 = sadd.s32 %s95, 1
      %s97 = scalar_select %p94, %s95, %s96
      %p100 = pneg %p94
      %p101 = scmp.eq.s32.totalorder %s17, 1
      %p102 = por %p100, %p101
      %p103 = scmp.ne.s32.totalorder %s95, %s98
      %p104 = scmp.eq.s32.totalorder %s17, 0
      %p105 = por %p103, %p104
      %p106 = scmp.ne.s32.totalorder %s95, %s98
      %p107 = scmp.eq.s32.totalorder %s22, 1
      %p108 = por %p106, %p107
      %p109 = scmp.ne.s32.totalorder %s98, %s99
      %p110 = scmp.eq.s32.totalorder %s22, 0
      %p111 = por %p109, %p110
      %p112 = scmp.ne.s32.totalorder %s98, %s99
      %p113 = scmp.eq.s32.totalorder %s23, 1
      %p114 = por %p112, %p113
      %p116 = scmp.ne.s32.totalorder %s99, %s115
      %p117 = scmp.eq.s32.totalorder %s23, 0
      %p118 = por %p116, %p117
      %s119 = ssub.s32 %s24, %s36
      %p120 = scmp.eq.s32.totalorder %s119, 0
      %s122 = sadd.s32 %s121, 1
      %s123 = scalar_select %p120, %s121, %s122
      %p126 = pneg %p120
      %p127 = scmp.eq.s32.totalorder %s17, 1
      %p128 = por %p126, %p127
      %p129 = scmp.ne.s32.totalorder %s121, %s124
      %p130 = scmp.eq.s32.totalorder %s17, 0
      %p131 = por %p129, %p130
      %p132 = scmp.ne.s32.totalorder %s121, %s124
      %p133 = scmp.eq.s32.totalorder %s22, 1
      %p134 = por %p132, %p133
      %p135 = scmp.ne.s32.totalorder %s124, %s125
      %p136 = scmp.eq.s32.totalorder %s22, 0
      %p137 = por %p135, %p136
      %p138 = scmp.ne.s32.totalorder %s124, %s125
      %p139 = scmp.eq.s32.totalorder %s23, 1
      %p140 = por %p138, %p139
      %p142 = scmp.ne.s32.totalorder %s125, %s141
      %p143 = scmp.eq.s32.totalorder %s23, 0
      %p144 = por %p142, %p143
      %s146 = sadd.s32 %s145, 1
      %p149 = scmp.eq.s32.totalorder %s17, 1
      %p150 = scmp.ne.s32.totalorder %s145, %s147
      %p151 = scmp.eq.s32.totalorder %s17, 0
      %p152 = por %p150, %p151
      %p153 = scmp.ne.s32.totalorder %s145, %s147
      %p154 = scmp.eq.s32.totalorder %s22, 1
      %p155 = por %p153, %p154
      %p156 = scmp.ne.s32.totalorder %s147, %s148
      %p157 = scmp.eq.s32.totalorder %s22, 0
      %p158 = por %p156, %p157
      %p159 = scmp.ne.s32.totalorder %s147, %s148
      %p160 = scmp.eq.s32.totalorder %s23, 1
      %p161 = por %p159, %p160
      %p163 = scmp.ne.s32.totalorder %s148, %s162
      %p164 = scmp.eq.s32.totalorder %s23, 0
      %p165 = por %p163, %p164
      %s167 = sadd.s32 %s166, 1
      %p170 = scmp.eq.s32.totalorder %s17, 1
      %p171 = scmp.ne.s32.totalorder %s166, %s168
      %p172 = scmp.eq.s32.totalorder %s17, 0
      %p173 = por %p171, %p172
      %p174 = scmp.ne.s32.totalorder %s166, %s168
      %p175 = scmp.eq.s32.totalorder %s22, 1
      %p176 = por %p174, %p175
      %p177 = scmp.ne.s32.totalorder %s168, %s169
      %p178 = scmp.eq.s32.totalorder %s22, 0
      %p179 = por %p177, %p178
      %p180 = scmp.ne.s32.totalorder %s168, %s169
      %p181 = scmp.eq.s32.totalorder %s23, 1
      %p182 = por %p180, %p181
      %p184 = scmp.ne.s32.totalorder %s169, %s183
      %p185 = scmp.eq.s32.totalorder %s23, 0
      %p186 = por %p184, %p185
      %s188 = sadd.s32 %s187, 1
      %p191 = scmp.eq.s32.totalorder %s17, 1
      %p192 = scmp.ne.s32.totalorder %s187, %s189
      %p193 = scmp.eq.s32.totalorder %s17, 0
      %p194 = por %p192, %p193
      %p195 = scmp.ne.s32.totalorder %s187, %s189
      %p196 = scmp.eq.s32.totalorder %s22, 1
      %p197 = por %p195, %p196
      %p198 = scmp.ne.s32.totalorder %s189, %s190
      %p199 = scmp.eq.s32.totalorder %s22, 0
      %p200 = por %p198, %p199
      %p201 = scmp.ne.s32.totalorder %s189, %s190
      %p202 = scmp.eq.s32.totalorder %s23, 1
      %p203 = por %p201, %p202
      %p205 = scmp.ne.s32.totalorder %s190, %s204
      %p206 = scmp.eq.s32.totalorder %s23, 0
      %p207 = por %p205, %p206
      %s209 = sadd.s32 %s208, 1
      %p212 = scmp.eq.s32.totalorder %s17, 1
      %p213 = scmp.ne.s32.totalorder %s208, %s210
      %p214 = scmp.eq.s32.totalorder %s17, 0
      %p215 = por %p213, %p214
      %p216 = scmp.ne.s32.totalorder %s208, %s210
      %p217 = scmp.eq.s32.totalorder %s22, 1
      %p218 = por %p216, %p217
      %p219 = scmp.ne.s32.totalorder %s210, %s211
      %p220 = scmp.eq.s32.totalorder %s22, 0
      %p221 = por %p219, %p220
      %p222 = scmp.ne.s32.totalorder %s210, %s211
      %p223 = scmp.eq.s32.totalorder %s23, 1
      %p224 = por %p222, %p223
      %p226 = scmp.ne.s32.totalorder %s211, %s225
      %p227 = scmp.eq.s32.totalorder %s23, 0
      %p228 = por %p226, %p227
      %s229 = ssub.s32 %s24, %s36
      %s230 = ssub.s32 %s25, %s32
      %s231 = sor.u32 %s229, %s230
      %p232 = scmp.eq.s32.totalorder %s231, 0
      %s234 = sadd.s32 %s233, 1
      %s235 = scalar_select %p232, %s233, %s234
      %p238 = pneg %p232
      %p239 = scmp.eq.s32.totalorder %s17, 1
      %p240 = por %p238, %p239
      %p241 = scmp.ne.s32.totalorder %s233, %s236
      %p242 = scmp.eq.s32.totalorder %s17, 0
      %p243 = por %p241, %p242
      %p244 = scmp.ne.s32.totalorder %s233, %s236
      %p245 = scmp.eq.s32.totalorder %s22, 1
      %p246 = por %p244, %p245
      %p247 = scmp.ne.s32.totalorder %s236, %s237
      %p248 = scmp.eq.s32.totalorder %s22, 0
      %p249 = por %p247, %p248
      %p250 = scmp.ne.s32.totalorder %s236, %s237
      %p251 = scmp.eq.s32.totalorder %s23, 1
      %p252 = por %p250, %p251
      %p254 = scmp.ne.s32.totalorder %s237, %s253
      %p255 = scmp.eq.s32.totalorder %s23, 0
      %p256 = por %p254, %p255
      %p257 = scmp.le.s32.totalorder 1, %s17
      %p258 = scmp.lt.s32.totalorder %s17, 3
      %p259 = pnand %p257, %p258
      %p260 = pneg %p259
      // Predicated region
      $region9: #{a_call__.1} parent=5 // pred_check
        _
      $region10: #{a_call__.1} parent=5 // pred_check_branch
        %262 = sbr.rel (%p259) target = $region12
      $region11: #{a_call__.1} parent=5 // pred_region
        %s263 = ssub.s32 %s17, 1
        // Predicated region
        $region13: #{a_call__.1} parent=11 // pred_check
          %p264 = pneg %p158
        $region14: #{a_call__.1} parent=11 // pred_check_branch
          %266 = sbr.rel (%p264) target = $region16
        $region15: #{a_call__.1} parent=11 // pred_region
          _
        $region16: #{a_call__.1} parent=11 // pred_fallthru
          _
        // Predicated region
        $region17: #{a_call__.1} parent=11 // pred_check
          %p267 = pneg %p179
        $region18: #{a_call__.1} parent=11 // pred_check_branch
          %269 = sbr.rel (%p267) target = $region20
        $region19: #{a_call__.1} parent=11 // pred_region
          _
        $region20: #{a_call__.1} parent=11 // pred_fallthru
          _
        // Predicated region
        $region21: #{a_call__.1} parent=11 // pred_check
          %p270 = pneg %p200
        $region22: #{a_call__.1} parent=11 // pred_check_branch
          %272 = sbr.rel (%p270) target = $region24
        $region23: #{a_call__.1} parent=11 // pred_region
          _
        $region24: #{a_call__.1} parent=11 // pred_fallthru
          _
        // Predicated region
        $region25: #{a_call__.1} parent=11 // pred_check
          %p273 = pneg %p221
        $region26: #{a_call__.1} parent=11 // pred_check_branch
          %275 = sbr.rel (%p273) target = $region28
        $region27: #{a_call__.1} parent=11 // pred_region
          _
        $region28: #{a_call__.1} parent=11 // pred_fallthru
          _
      $region12: #{a_call__.1} parent=5 // pred_fallthru
        _
      %p276 = scmp.lt.s32.totalorder %s17, 2
      // Predicated region
      $region29: #{a_call__.1} parent=5 // pred_check
        %p277 = pneg %p276
      $region30: #{a_call__.1} parent=5 // pred_check_branch
        %279 = sbr.rel (%p277) target = $region32
      $region31: #{a_call__.1} parent=5 // pred_region
        // Predicated region
        $region33: #{a_call__.1} parent=31 // pred_check
          %p280 = pneg %p51
        $region34: #{a_call__.1} parent=31 // pred_check_branch
          %282 = sbr.rel (%p280) target = $region36
        $region35: #{a_call__.1} parent=31 // pred_region
          %s283 = smul.u32 4, %s25
          %p284 = scmp.lt.s32.totalorder %s24, 1
          %s285 = scalar_select %p284, %s24, 1
          %p286 = scmp.lt.s32.totalorder %s283, 3
          %s287 = scalar_select %p286, %s283, 3
          %s288 = smul.addr %s285, 4
          %s289 = sadd.s32 %s287, %s288
          %s290 = smul.addr %s289, 4
          %s291 = scalar_lea.vmem %s0, %s290
          %s292 = smul.u32 4, %s25
        $region36: #{a_call__.1} parent=31 // pred_fallthru
          _
        // Predicated region
        $region37: #{a_call__.1} parent=31 // pred_check
          %p293 = pneg %p77
        $region38: #{a_call__.1} parent=31 // pred_check_branch
          %295 = sbr.rel (%p293) target = $region40
        $region39: #{a_call__.1} parent=31 // pred_region
          %p296 = scmp.lt.s32.totalorder %s24, 1
          %s297 = scalar_select %p296, %s24, 1
          %s298 = smul.addr %s297, 2
          %s299 = smul.addr %s298, 8
          %s300 = scalar_lea.vmem %s1, %s299
        $region40: #{a_call__.1} parent=31 // pred_fallthru
          _
        // Predicated region
        $region41: #{a_call__.1} parent=31 // pred_check
          %p301 = pneg %p105
        $region42: #{a_call__.1} parent=31 // pred_check_branch
          %303 = sbr.rel (%p301) target = $region44
        $region43: #{a_call__.1} parent=31 // pred_region
          %s304 = smul.u32 4, %s25
          %p305 = scmp.lt.s32.totalorder %s24, 1
          %s306 = scalar_select %p305, %s24, 1
          %p307 = scmp.lt.s32.totalorder %s304, 3
          %s308 = scalar_select %p307, %s304, 3
          %s309 = smul.addr %s306, 8
          %s310 = sadd.s32 %s308, %s309
          %s311 = smul.addr %s310, 4
          %s312 = scalar_lea.vmem %s2, %s311
          %s313 = smul.u32 4, %s25
        $region44: #{a_call__.1} parent=31 // pred_fallthru
          _
        // Predicated region
        $region45: #{a_call__.1} parent=31 // pred_check
          %p314 = pneg %p131
        $region46: #{a_call__.1} parent=31 // pred_check_branch
          %316 = sbr.rel (%p314) target = $region48
        $region47: #{a_call__.1} parent=31 // pred_region
          %p317 = scmp.lt.s32.totalorder %s24, 1
          %s318 = scalar_select %p317, %s24, 1
          %s319 = smul.addr %s318, 8
          %s320 = smul.addr %s319, 4
          %s321 = scalar_lea.vmem %s3, %s320
        $region48: #{a_call__.1} parent=31 // pred_fallthru
          _
      $region32: #{a_call__.1} parent=5 // pred_fallthru
        _
      %p322 = scmp.le.s32.totalorder 1, %s17
      %p323 = scmp.lt.s32.totalorder %s17, 3
      %p324 = pnand %p322, %p323
      %p325 = pneg %p324
      // Predicated region
      $region49: #{a_call__.1} parent=5 // pred_check
        _
      $region50: #{a_call__.1} parent=5 // pred_check_branch
        %327 = sbr.rel (%p324) target = $region52
      $region51: #{a_call__.1} parent=5 // pred_region
        %s328 = ssub.s32 %s17, 1
        %s329 = smul.u32 4, %s27
        %p330 = scmp.lt.s32.totalorder %s26, 1
        %s331 = scalar_select %p330, %s26, 1
        %p332 = scmp.lt.s32.totalorder %s329, 3
        %s333 = scalar_select %p332, %s329, 3
        %s334 = smul.addr %s331, 4
        %s335 = sadd.s32 %s333, %s334
        %s336 = smul.addr %s335, 4
        %s337 = scalar_lea.vmem %s0, %s336
        %p338 = pneg %p57
        %p339 = pneg %p54
        %p340 = scmp.lt.s32.totalorder %s26, 1
        %s341 = scalar_select %p340, %s26, 1
        %s342 = smul.addr %s341, 2
        %s343 = smul.addr %s342, 8
        %s344 = scalar_lea.vmem %s1, %s343
        %p345 = pneg %p83
        %p346 = pneg %p80
        %s347 = smul.u32 4, %s27
        %p348 = scmp.lt.s32.totalorder %s26, 1
        %s349 = scalar_select %p348, %s26, 1
        %p350 = scmp.lt.s32.totalorder %s347, 3
        %s351 = scalar_select %p350, %s347, 3
        %s352 = smul.addr %s349, 8
        %s353 = sadd.s32 %s351, %s352
        %s354 = smul.addr %s353, 4
        %s355 = scalar_lea.vmem %s2, %s354
        %p356 = pneg %p111
        %p357 = pneg %p108
        %p358 = scmp.lt.s32.totalorder %s26, 1
        %s359 = scalar_select %p358, %s26, 1
        %s360 = smul.addr %s359, 8
        %s361 = smul.addr %s360, 4
        %s362 = scalar_lea.vmem %s3, %s361
        %p363 = pneg %p137
        %p364 = pneg %p134
        %p365 = pneg %p158
        %p366 = pneg %p155
        %p367 = pneg %p179
        %p368 = pneg %p176
        %p369 = pneg %p200
        %p370 = pneg %p197
        %p371 = pneg %p221
        %p372 = pneg %p218
        %p373 = pneg %p249
        %p374 = pneg %p246
        %s375 = sand.u32 %s236, 1
        %s376 = scalar_lea.sflag [#allocation3], %s375
        %s377 = sand.u32 %s236, 1
        %s378 = smul.addr %s377, 64
        %s379 = scalar_lea.vmem [#allocation2], %s378
        %s380 = smul.u32 4, %s27
        %p381 = scmp.lt.s32.totalorder %s26, 1
        %s382 = scalar_select %p381, %s26, 1
        %p383 = scmp.lt.s32.totalorder %s380, 3
        %s384 = scalar_select %p383, %s380, 3
        %s385 = smul.addr %s382, 4
        %s386 = sadd.s32 %s384, %s385
        %s387 = smul.addr %s386, 4
        %s388 = scalar_lea.vmem %s0, %s387
        %s389 = smul.u32 4, %s27
        %p390 = scmp.lt.s32.totalorder %s26, 1
        %s391 = scalar_select %p390, %s26, 1
        %s392 = smul.addr %s391, 2
        %s393 = smul.addr %s392, 8
        %s394 = scalar_lea.vmem %s1, %s393
        %s395 = smul.u32 4, %s27
        %p396 = scmp.lt.s32.totalorder %s26, 1
        %s397 = scalar_select %p396, %s26, 1
        %p398 = scmp.lt.s32.totalorder %s395, 3
        %s399 = scalar_select %p398, %s395, 3
        %s400 = smul.addr %s397, 8
        %s401 = sadd.s32 %s399, %s400
        %s402 = smul.addr %s401, 4
        %s403 = scalar_lea.vmem %s2, %s402
        %s404 = smul.u32 4, %s27
        %p405 = scmp.lt.s32.totalorder %s26, 1
        %s406 = scalar_select %p405, %s26, 1
        %s407 = smul.addr %s406, 8
        %s408 = smul.addr %s407, 4
        %s409 = scalar_lea.vmem %s3, %s408
        %s410 = smul.u32 4, %s27
        %v412 = vld [vmem:[%s388] sm:$0x77]
        %v413 = vld [vmem:[%s388 + $0x8] sm:$0x77]
        %v414 = vld [vmem:[%s394] sm:$0xff]
        %v415 = vld [vmem:[%s394 + $0x8] sm:$0xff]
        %417 = vset.pattern.permute.xlu0 0
        %418 = vperm.xlu0 %417, %v414
        %v419 = vpop.permute.xlu0 %418
        %422 = vset.pattern.permute.xlu0 0
        %423 = vperm.xlu0 %422, %v415
        %v424 = vpop.permute.xlu0 %423
        %v428 = vlaneseq
        %v429 = vshrl.u32 %v428, 7
        %v430 = vsub.s32 0, %v429
        %v431 = vrot.slane %v412, %v430
        %v432 = vlaneseq
        %v433 = vshrl.u32 %v432, 7
        %v434 = vsub.s32 4, %v433
        %v435 = vrot.slane %v412, %v434
        %v436 = vlaneseq
        %v437 = vshrl.u32 %v436, 7
        %v438 = vsub.s32 0, %v437
        %v439 = vrot.slane %v413, %v438
        %v440 = vlaneseq
        %v441 = vshrl.u32 %v440, 7
        %v442 = vsub.s32 4, %v441
        %v443 = vrot.slane %v413, %v442
        %v448 = vlaneseq
        %v449 = vshrl.u32 %v448, 7
        %v450 = vsub.s32 0, %v449
        %v451 = vrot.slane %v431, %v450
        %v452 = vlaneseq
        %v453 = vshrl.u32 %v452, 7
        %v454 = vsub.s32 0, %v453
        %v455 = vrot.slane %v435, %v454
        %v456 = vlaneseq
        %v457 = vshrl.u32 %v456, 7
        %v458 = vsub.s32 0, %v457
        %v459 = vrot.slane %v439, %v458
        %v460 = vlaneseq
        %v461 = vshrl.u32 %v460, 7
        %v462 = vsub.s32 0, %v461
        %v463 = vrot.slane %v443, %v462
        %v464 = vsub.f32 %v419, %v451
        %v465 = vsub.f32 %v419, %v455
        %v466 = vsub.f32 %v419, %v459
        %v467 = vsub.f32 %v419, %v463
        %v468 = vsub.f32 %v424, %v451
        %v469 = vsub.f32 %v424, %v455
        %v470 = vsub.f32 %v424, %v459
        %v471 = vsub.f32 %v424, %v463
        %v472 = vmul.f32 %v464, %v464
        %v473 = vmul.f32 %v465, %v465
        %v474 = vmul.f32 %v466, %v466
        %v475 = vmul.f32 %v467, %v467
        %v476 = vmul.f32 %v468, %v468
        %v477 = vmul.f32 %v469, %v469
        %v478 = vmul.f32 %v470, %v470
        %v479 = vmul.f32 %v471, %v471
        %v480 = vadd.f32 %v472, 0.0
        %v481 = vadd.f32 %v473, 0.0
        %v482 = vadd.f32 %v474, 0.0
        %v483 = vadd.f32 %v475, 0.0
        %v484 = vadd.f32 %v476, 0.0
        %v485 = vadd.f32 %v477, 0.0
        %v486 = vadd.f32 %v478, 0.0
        %v487 = vadd.f32 %v479, 0.0
        %488 = vset.pattern.permute.xlu0 1
        %489 = vperm.xlu0 %488, %v414
        %v490 = vpop.permute.xlu0 %489
        %492 = vset.pattern.permute.xlu0 1
        %493 = vperm.xlu0 %492, %v415
        %v494 = vpop.permute.xlu0 %493
        %v496 = vlaneseq
        %v497 = vshrl.u32 %v496, 7
        %v498 = vsub.s32 1, %v497
        %v499 = vrot.slane %v412, %v498
        %v500 = vlaneseq
        %v501 = vshrl.u32 %v500, 7
        %v502 = vsub.s32 5, %v501
        %v503 = vrot.slane %v412, %v502
        %v504 = vlaneseq
        %v505 = vshrl.u32 %v504, 7
        %v506 = vsub.s32 1, %v505
        %v507 = vrot.slane %v413, %v506
        %v508 = vlaneseq
        %v509 = vshrl.u32 %v508, 7
        %v510 = vsub.s32 5, %v509
        %v511 = vrot.slane %v413, %v510
        %v516 = vlaneseq
        %v517 = vshrl.u32 %v516, 7
        %v518 = vsub.s32 1, %v517
        %v519 = vrot.slane %v499, %v518
        %v520 = vlaneseq
        %v521 = vshrl.u32 %v520, 7
        %v522 = vsub.s32 1, %v521
        %v523 = vrot.slane %v503, %v522
        %v524 = vlaneseq
        %v525 = vshrl.u32 %v524, 7
        %v526 = vsub.s32 1, %v525
        %v527 = vrot.slane %v507, %v526
        %v528 = vlaneseq
        %v529 = vshrl.u32 %v528, 7
        %v530 = vsub.s32 1, %v529
        %v531 = vrot.slane %v511, %v530
        %v532 = vsub.f32 %v490, %v519
        %v533 = vsub.f32 %v490, %v523
        %v534 = vsub.f32 %v490, %v527
        %v535 = vsub.f32 %v490, %v531
        %v536 = vsub.f32 %v494, %v519
        %v537 = vsub.f32 %v494, %v523
        %v538 = vsub.f32 %v494, %v527
        %v539 = vsub.f32 %v494, %v531
        %v540 = vmul.f32 %v532, %v532
        %v541 = vmul.f32 %v533, %v533
        %v542 = vmul.f32 %v534, %v534
        %v543 = vmul.f32 %v535, %v535
        %v544 = vmul.f32 %v536, %v536
        %v545 = vmul.f32 %v537, %v537
        %v546 = vmul.f32 %v538, %v538
        %v547 = vmul.f32 %v539, %v539
        %v548 = vadd.f32 %v480, %v540
        %v549 = vadd.f32 %v481, %v541
        %v550 = vadd.f32 %v482, %v542
        %v551 = vadd.f32 %v483, %v543
        %v552 = vadd.f32 %v484, %v544
        %v553 = vadd.f32 %v485, %v545
        %v554 = vadd.f32 %v486, %v546
        %v555 = vadd.f32 %v487, %v547
        %556 = vset.pattern.permute.xlu0 2
        %557 = vperm.xlu0 %556, %v414
        %v558 = vpop.permute.xlu0 %557
        %560 = vset.pattern.permute.xlu0 2
        %561 = vperm.xlu0 %560, %v415
        %v562 = vpop.permute.xlu0 %561
        %v564 = vlaneseq
        %v565 = vshrl.u32 %v564, 7
        %v566 = vsub.s32 2, %v565
        %v567 = vrot.slane %v412, %v566
        %v568 = vlaneseq
        %v569 = vshrl.u32 %v568, 7
        %v570 = vsub.s32 6, %v569
        %v571 = vrot.slane %v412, %v570
        %v572 = vlaneseq
        %v573 = vshrl.u32 %v572, 7
        %v574 = vsub.s32 2, %v573
        %v575 = vrot.slane %v413, %v574
        %v576 = vlaneseq
        %v577 = vshrl.u32 %v576, 7
        %v578 = vsub.s32 6, %v577
        %v579 = vrot.slane %v413, %v578
        %v584 = vlaneseq
        %v585 = vshrl.u32 %v584, 7
        %v586 = vsub.s32 2, %v585
        %v587 = vrot.slane %v567, %v586
        %v588 = vlaneseq
        %v589 = vshrl.u32 %v588, 7
        %v590 = vsub.s32 2, %v589
        %v591 = vrot.slane %v571, %v590
        %v592 = vlaneseq
        %v593 = vshrl.u32 %v592, 7
        %v594 = vsub.s32 2, %v593
        %v595 = vrot.slane %v575, %v594
        %v596 = vlaneseq
        %v597 = vshrl.u32 %v596, 7
        %v598 = vsub.s32 2, %v597
        %v599 = vrot.slane %v579, %v598
        %v600 = vsub.f32 %v558, %v587
        %v601 = vsub.f32 %v558, %v591
        %v602 = vsub.f32 %v558, %v595
        %v603 = vsub.f32 %v558, %v599
        %v604 = vsub.f32 %v562, %v587
        %v605 = vsub.f32 %v562, %v591
        %v606 = vsub.f32 %v562, %v595
        %v607 = vsub.f32 %v562, %v599
        %v608 = vmul.f32 %v600, %v600
        %v609 = vmul.f32 %v601, %v601
        %v610 = vmul.f32 %v602, %v602
        %v611 = vmul.f32 %v603, %v603
        %v612 = vmul.f32 %v604, %v604
        %v613 = vmul.f32 %v605, %v605
        %v614 = vmul.f32 %v606, %v606
        %v615 = vmul.f32 %v607, %v607
        %v616 = vadd.f32 %v548, %v608
        %v617 = vadd.f32 %v549, %v609
        %v618 = vadd.f32 %v550, %v610
        %v619 = vadd.f32 %v551, %v611
        %v620 = vadd.f32 %v552, %v612
        %v621 = vadd.f32 %v553, %v613
        %v622 = vadd.f32 %v554, %v614
        %v623 = vadd.f32 %v555, %v615
        %v624 = vlaneseq
        %v625 = vshrl.u32 %v624, 7
        %v626 = vadd.s32 %v625, 8
        %v627 = vmin.f32 %v616, %v620
        %v628 = vrot.slane %v627, 4
        %v629 = vmin.f32 %v627, %v628
        %v630 = vrot.slane %v629, 2
        %v631 = vmin.f32 %v629, %v630
        %v632 = vrot.slane %v631, 1
        %v633 = vmin.f32 %v631, %v632
        %v634 = vmin.f32 %v617, %v621
        %v635 = vrot.slane %v634, 4
        %v636 = vmin.f32 %v634, %v635
        %v637 = vrot.slane %v636, 2
        %v638 = vmin.f32 %v636, %v637
        %v639 = vrot.slane %v638, 1
        %v640 = vmin.f32 %v638, %v639
        %v641 = vmin.f32 %v618, %v622
        %v642 = vrot.slane %v641, 4
        %v643 = vmin.f32 %v641, %v642
        %v644 = vrot.slane %v643, 2
        %v645 = vmin.f32 %v643, %v644
        %v646 = vrot.slane %v645, 1
        %v647 = vmin.f32 %v645, %v646
        %v648 = vmin.f32 %v619, %v623
        %v649 = vrot.slane %v648, 4
        %v650 = vmin.f32 %v648, %v649
        %v651 = vrot.slane %v650, 2
        %v652 = vmin.f32 %v650, %v651
        %v653 = vrot.slane %v652, 1
        %v654 = vmin.f32 %v652, %v653
        %vm655 = vcmp.le.f32.partialorder %v616, %v633
        %vm656 = vcmp.le.f32.partialorder %v617, %v640
        %vm657 = vcmp.le.f32.partialorder %v618, %v647
        %vm658 = vcmp.le.f32.partialorder %v619, %v654
        %vm659 = vcmp.le.f32.partialorder %v620, %v633
        %vm660 = vcmp.le.f32.partialorder %v621, %v640
        %vm661 = vcmp.le.f32.partialorder %v622, %v647
        %vm662 = vcmp.le.f32.partialorder %v623, %v654
        %v663 = vsel %vm655, %v625, 16
        %v664 = vsel %vm656, %v625, 16
        %v665 = vsel %vm657, %v625, 16
        %v666 = vsel %vm658, %v625, 16
        %v667 = vsel %vm659, %v626, 16
        %v668 = vsel %vm660, %v626, 16
        %v669 = vsel %vm661, %v626, 16
        %v670 = vsel %vm662, %v626, 16
        %vm671 = vcmp.lt.s32.totalorder %v663, %v667
        %v672 = vsel %vm671, %v663, %v667
        %v673 = vrot.slane %v672, 4
        %vm674 = vcmp.lt.s32.totalorder %v672, %v673
        %v675 = vsel %vm674, %v672, %v673
        %v676 = vrot.slane %v675, 2
        %vm677 = vcmp.lt.s32.totalorder %v675, %v676
        %v678 = vsel %vm677, %v675, %v676
        %v679 = vrot.slane %v678, 1
        %vm680 = vcmp.lt.s32.totalorder %v678, %v679
        %v681 = vsel %vm680, %v678, %v679
        %vm682 = vcmp.lt.s32.totalorder %v664, %v668
        %v683 = vsel %vm682, %v664, %v668
        %v684 = vrot.slane %v683, 4
        %vm685 = vcmp.lt.s32.totalorder %v683, %v684
        %v686 = vsel %vm685, %v683, %v684
        %v687 = vrot.slane %v686, 2
        %vm688 = vcmp.lt.s32.totalorder %v686, %v687
        %v689 = vsel %vm688, %v686, %v687
        %v690 = vrot.slane %v689, 1
        %vm691 = vcmp.lt.s32.totalorder %v689, %v690
        %v692 = vsel %vm691, %v689, %v690
        %vm693 = vcmp.lt.s32.totalorder %v665, %v669
        %v694 = vsel %vm693, %v665, %v669
        %v695 = vrot.slane %v694, 4
        %vm696 = vcmp.lt.s32.totalorder %v694, %v695
        %v697 = vsel %vm696, %v694, %v695
        %v698 = vrot.slane %v697, 2
        %vm699 = vcmp.lt.s32.totalorder %v697, %v698
        %v700 = vsel %vm699, %v697, %v698
        %v701 = vrot.slane %v700, 1
        %vm702 = vcmp.lt.s32.totalorder %v700, %v701
        %v703 = vsel %vm702, %v700, %v701
        %vm704 = vcmp.lt.s32.totalorder %v666, %v670
        %v705 = vsel %vm704, %v666, %v670
        %v706 = vrot.slane %v705, 4
        %vm707 = vcmp.lt.s32.totalorder %v705, %v706
        %v708 = vsel %vm707, %v705, %v706
        %v709 = vrot.slane %v708, 2
        %vm710 = vcmp.lt.s32.totalorder %v708, %v709
        %v711 = vsel %vm710, %v708, %v709
        %v712 = vrot.slane %v711, 1
        %vm713 = vcmp.lt.s32.totalorder %v711, %v712
        %v714 = vsel %vm713, %v711, %v712
        %vm715 = vcmp.eq.s32.totalorder %v625, %v681
        %vm716 = vcmp.eq.s32.totalorder %v625, %v692
        %vm717 = vcmp.eq.s32.totalorder %v625, %v703
        %vm718 = vcmp.eq.s32.totalorder %v625, %v714
        %vm719 = vcmp.eq.s32.totalorder %v626, %v681
        %vm720 = vcmp.eq.s32.totalorder %v626, %v692
        %vm721 = vcmp.eq.s32.totalorder %v626, %v703
        %vm722 = vcmp.eq.s32.totalorder %v626, %v714
        %v723 = vadd.f32 %v633, 1e-08
        %v724 = vadd.f32 %v640, 1e-08
        %v725 = vadd.f32 %v647, 1e-08
        %v726 = vadd.f32 %v654, 1e-08
        %v727 = vrcp.pop %v723
        %v728 = vmul.f32 1.0, %v727
        %v729 = vrcp.pop %v724
        %v730 = vmul.f32 1.0, %v729
        %v731 = vrcp.pop %v725
        %v732 = vmul.f32 1.0, %v731
        %v733 = vrcp.pop %v726
        %v734 = vmul.f32 1.0, %v733
        %v735 = vsel %vm715, %v728, 0.0
        %v736 = vsel %vm716, %v730, 0.0
        %v737 = vsel %vm717, %v732, 0.0
        %v738 = vsel %vm718, %v734, 0.0
        %v739 = vsel %vm719, %v728, 0.0
        %v740 = vsel %vm720, %v730, 0.0
        %v741 = vsel %vm721, %v732, 0.0
        %v742 = vsel %vm722, %v734, 0.0
        %v743 = vadd.f32 %v735, 0.0
        %v744 = vadd.f32 %v736, 0.0
        %v745 = vadd.f32 %v737, 0.0
        %v746 = vadd.f32 %v738, 0.0
        %v747 = vadd.f32 %v739, 0.0
        %v748 = vadd.f32 %v740, 0.0
        %v749 = vadd.f32 %v741, 0.0
        %v750 = vadd.f32 %v742, 0.0
        %v751 = vadd.f32 %v728, 0.0
        %v752 = vadd.f32 %v730, 0.0
        %v753 = vadd.f32 %v732, 0.0
        %v754 = vadd.f32 %v734, 0.0
        %v755 = vsel %vm715, inf, %v616
        %v756 = vsel %vm716, inf, %v617
        %v757 = vsel %vm717, inf, %v618
        %v758 = vsel %vm718, inf, %v619
        %v759 = vsel %vm719, inf, %v620
        %v760 = vsel %vm720, inf, %v621
        %v761 = vsel %vm721, inf, %v622
        %v762 = vsel %vm722, inf, %v623
        %v763 = vmin.f32 %v755, %v759
        %v764 = vrot.slane %v763, 4
        %v765 = vmin.f32 %v763, %v764
        %v766 = vrot.slane %v765, 2
        %v767 = vmin.f32 %v765, %v766
        %v768 = vrot.slane %v767, 1
        %v769 = vmin.f32 %v767, %v768
        %v770 = vmin.f32 %v756, %v760
        %v771 = vrot.slane %v770, 4
        %v772 = vmin.f32 %v770, %v771
        %v773 = vrot.slane %v772, 2
        %v774 = vmin.f32 %v772, %v773
        %v775 = vrot.slane %v774, 1
        %v776 = vmin.f32 %v774, %v775
        %v777 = vmin.f32 %v757, %v761
        %v778 = vrot.slane %v777, 4
        %v779 = vmin.f32 %v777, %v778
        %v780 = vrot.slane %v779, 2
        %v781 = vmin.f32 %v779, %v780
        %v782 = vrot.slane %v781, 1
        %v783 = vmin.f32 %v781, %v782
        %v784 = vmin.f32 %v758, %v762
        %v785 = vrot.slane %v784, 4
        %v786 = vmin.f32 %v784, %v785
        %v787 = vrot.slane %v786, 2
        %v788 = vmin.f32 %v786, %v787
        %v789 = vrot.slane %v788, 1
        %v790 = vmin.f32 %v788, %v789
        %vm791 = vcmp.le.f32.partialorder %v755, %v769
        %vm792 = vcmp.le.f32.partialorder %v756, %v776
        %vm793 = vcmp.le.f32.partialorder %v757, %v783
        %vm794 = vcmp.le.f32.partialorder %v758, %v790
        %vm795 = vcmp.le.f32.partialorder %v759, %v769
        %vm796 = vcmp.le.f32.partialorder %v760, %v776
        %vm797 = vcmp.le.f32.partialorder %v761, %v783
        %vm798 = vcmp.le.f32.partialorder %v762, %v790
        %v799 = vsel %vm791, %v625, 16
        %v800 = vsel %vm792, %v625, 16
        %v801 = vsel %vm793, %v625, 16
        %v802 = vsel %vm794, %v625, 16
        %v803 = vsel %vm795, %v626, 16
        %v804 = vsel %vm796, %v626, 16
        %v805 = vsel %vm797, %v626, 16
        %v806 = vsel %vm798, %v626, 16
        %vm807 = vcmp.lt.s32.totalorder %v799, %v803
        %v808 = vsel %vm807, %v799, %v803
        %v809 = vrot.slane %v808, 4
        %vm810 = vcmp.lt.s32.totalorder %v808, %v809
        %v811 = vsel %vm810, %v808, %v809
        %v812 = vrot.slane %v811, 2
        %vm813 = vcmp.lt.s32.totalorder %v811, %v812
        %v814 = vsel %vm813, %v811, %v812
        %v815 = vrot.slane %v814, 1
        %vm816 = vcmp.lt.s32.totalorder %v814, %v815
        %v817 = vsel %vm816, %v814, %v815
        %vm818 = vcmp.lt.s32.totalorder %v800, %v804
        %v819 = vsel %vm818, %v800, %v804
        %v820 = vrot.slane %v819, 4
        %vm821 = vcmp.lt.s32.totalorder %v819, %v820
        %v822 = vsel %vm821, %v819, %v820
        %v823 = vrot.slane %v822, 2
        %vm824 = vcmp.lt.s32.totalorder %v822, %v823
        %v825 = vsel %vm824, %v822, %v823
        %v826 = vrot.slane %v825, 1
        %vm827 = vcmp.lt.s32.totalorder %v825, %v826
        %v828 = vsel %vm827, %v825, %v826
        %vm829 = vcmp.lt.s32.totalorder %v801, %v805
        %v830 = vsel %vm829, %v801, %v805
        %v831 = vrot.slane %v830, 4
        %vm832 = vcmp.lt.s32.totalorder %v830, %v831
        %v833 = vsel %vm832, %v830, %v831
        %v834 = vrot.slane %v833, 2
        %vm835 = vcmp.lt.s32.totalorder %v833, %v834
        %v836 = vsel %vm835, %v833, %v834
        %v837 = vrot.slane %v836, 1
        %vm838 = vcmp.lt.s32.totalorder %v836, %v837
        %v839 = vsel %vm838, %v836, %v837
        %vm840 = vcmp.lt.s32.totalorder %v802, %v806
        %v841 = vsel %vm840, %v802, %v806
        %v842 = vrot.slane %v841, 4
        %vm843 = vcmp.lt.s32.totalorder %v841, %v842
        %v844 = vsel %vm843, %v841, %v842
        %v845 = vrot.slane %v844, 2
        %vm846 = vcmp.lt.s32.totalorder %v844, %v845
        %v847 = vsel %vm846, %v844, %v845
        %v848 = vrot.slane %v847, 1
        %vm849 = vcmp.lt.s32.totalorder %v847, %v848
        %v850 = vsel %vm849, %v847, %v848
        %vm851 = vcmp.eq.s32.totalorder %v625, %v817
        %vm852 = vcmp.eq.s32.totalorder %v625, %v828
        %vm853 = vcmp.eq.s32.totalorder %v625, %v839
        %vm854 = vcmp.eq.s32.totalorder %v625, %v850
        %vm855 = vcmp.eq.s32.totalorder %v626, %v817
        %vm856 = vcmp.eq.s32.totalorder %v626, %v828
        %vm857 = vcmp.eq.s32.totalorder %v626, %v839
        %vm858 = vcmp.eq.s32.totalorder %v626, %v850
        %v859 = vadd.f32 %v769, 1e-08
        %v860 = vadd.f32 %v776, 1e-08
        %v861 = vadd.f32 %v783, 1e-08
        %v862 = vadd.f32 %v790, 1e-08
        %v863 = vrcp.pop %v859
        %v864 = vmul.f32 1.0, %v863
        %v865 = vrcp.pop %v860
        %v866 = vmul.f32 1.0, %v865
        %v867 = vrcp.pop %v861
        %v868 = vmul.f32 1.0, %v867
        %v869 = vrcp.pop %v862
        %v870 = vmul.f32 1.0, %v869
        %v871 = vsel %vm851, %v864, 0.0
        %v872 = vsel %vm852, %v866, 0.0
        %v873 = vsel %vm853, %v868, 0.0
        %v874 = vsel %vm854, %v870, 0.0
        %v875 = vsel %vm855, %v864, 0.0
        %v876 = vsel %vm856, %v866, 0.0
        %v877 = vsel %vm857, %v868, 0.0
        %v878 = vsel %vm858, %v870, 0.0
        %v879 = vadd.f32 %v743, %v871
        %v880 = vadd.f32 %v744, %v872
        %v881 = vadd.f32 %v745, %v873
        %v882 = vadd.f32 %v746, %v874
        %v883 = vadd.f32 %v747, %v875
        %v884 = vadd.f32 %v748, %v876
        %v885 = vadd.f32 %v749, %v877
        %v886 = vadd.f32 %v750, %v878
        %v887 = vadd.f32 %v751, %v864
        %v888 = vadd.f32 %v752, %v866
        %v889 = vadd.f32 %v753, %v868
        %v890 = vadd.f32 %v754, %v870
        %v891 = vsel %vm851, inf, %v755
        %v892 = vsel %vm852, inf, %v756
        %v893 = vsel %vm853, inf, %v757
        %v894 = vsel %vm854, inf, %v758
        %v895 = vsel %vm855, inf, %v759
        %v896 = vsel %vm856, inf, %v760
        %v897 = vsel %vm857, inf, %v761
        %v898 = vsel %vm858, inf, %v762
        %v899 = vmin.f32 %v891, %v895
        %v900 = vrot.slane %v899, 4
        %v901 = vmin.f32 %v899, %v900
        %v902 = vrot.slane %v901, 2
        %v903 = vmin.f32 %v901, %v902
        %v904 = vrot.slane %v903, 1
        %v905 = vmin.f32 %v903, %v904
        %v906 = vmin.f32 %v892, %v896
        %v907 = vrot.slane %v906, 4
        %v908 = vmin.f32 %v906, %v907
        %v909 = vrot.slane %v908, 2
        %v910 = vmin.f32 %v908, %v909
        %v911 = vrot.slane %v910, 1
        %v912 = vmin.f32 %v910, %v911
        %v913 = vmin.f32 %v893, %v897
        %v914 = vrot.slane %v913, 4
        %v915 = vmin.f32 %v913, %v914
        %v916 = vrot.slane %v915, 2
        %v917 = vmin.f32 %v915, %v916
        %v918 = vrot.slane %v917, 1
        %v919 = vmin.f32 %v917, %v918
        %v920 = vmin.f32 %v894, %v898
        %v921 = vrot.slane %v920, 4
        %v922 = vmin.f32 %v920, %v921
        %v923 = vrot.slane %v922, 2
        %v924 = vmin.f32 %v922, %v923
        %v925 = vrot.slane %v924, 1
        %v926 = vmin.f32 %v924, %v925
        %vm927 = vcmp.le.f32.partialorder %v891, %v905
        %vm928 = vcmp.le.f32.partialorder %v892, %v912
        %vm929 = vcmp.le.f32.partialorder %v893, %v919
        %vm930 = vcmp.le.f32.partialorder %v894, %v926
        %vm931 = vcmp.le.f32.partialorder %v895, %v905
        %vm932 = vcmp.le.f32.partialorder %v896, %v912
        %vm933 = vcmp.le.f32.partialorder %v897, %v919
        %vm934 = vcmp.le.f32.partialorder %v898, %v926
        %v935 = vsel %vm927, %v625, 16
        %v936 = vsel %vm928, %v625, 16
        %v937 = vsel %vm929, %v625, 16
        %v938 = vsel %vm930, %v625, 16
        %v939 = vsel %vm931, %v626, 16
        %v940 = vsel %vm932, %v626, 16
        %v941 = vsel %vm933, %v626, 16
        %v942 = vsel %vm934, %v626, 16
        %vm943 = vcmp.lt.s32.totalorder %v935, %v939
        %v944 = vsel %vm943, %v935, %v939
        %v945 = vrot.slane %v944, 4
        %vm946 = vcmp.lt.s32.totalorder %v944, %v945
        %v947 = vsel %vm946, %v944, %v945
        %v948 = vrot.slane %v947, 2
        %vm949 = vcmp.lt.s32.totalorder %v947, %v948
        %v950 = vsel %vm949, %v947, %v948
        %v951 = vrot.slane %v950, 1
        %vm952 = vcmp.lt.s32.totalorder %v950, %v951
        %v953 = vsel %vm952, %v950, %v951
        %vm954 = vcmp.lt.s32.totalorder %v936, %v940
        %v955 = vsel %vm954, %v936, %v940
        %v956 = vrot.slane %v955, 4
        %vm957 = vcmp.lt.s32.totalorder %v955, %v956
        %v958 = vsel %vm957, %v955, %v956
        %v959 = vrot.slane %v958, 2
        %vm960 = vcmp.lt.s32.totalorder %v958, %v959
        %v961 = vsel %vm960, %v958, %v959
        %v962 = vrot.slane %v961, 1
        %vm963 = vcmp.lt.s32.totalorder %v961, %v962
        %v964 = vsel %vm963, %v961, %v962
        %vm965 = vcmp.lt.s32.totalorder %v937, %v941
        %v966 = vsel %vm965, %v937, %v941
        %v967 = vrot.slane %v966, 4
        %vm968 = vcmp.lt.s32.totalorder %v966, %v967
        %v969 = vsel %vm968, %v966, %v967
        %v970 = vrot.slane %v969, 2
        %vm971 = vcmp.lt.s32.totalorder %v969, %v970
        %v972 = vsel %vm971, %v969, %v970
        %v973 = vrot.slane %v972, 1
        %vm974 = vcmp.lt.s32.totalorder %v972, %v973
        %v975 = vsel %vm974, %v972, %v973
        %vm976 = vcmp.lt.s32.totalorder %v938, %v942
        %v977 = vsel %vm976, %v938, %v942
        %v978 = vrot.slane %v977, 4
        %vm979 = vcmp.lt.s32.totalorder %v977, %v978
        %v980 = vsel %vm979, %v977, %v978
        %v981 = vrot.slane %v980, 2
        %vm982 = vcmp.lt.s32.totalorder %v980, %v981
        %v983 = vsel %vm982, %v980, %v981
        %v984 = vrot.slane %v983, 1
        %vm985 = vcmp.lt.s32.totalorder %v983, %v984
        %v986 = vsel %vm985, %v983, %v984
        %vm987 = vcmp.eq.s32.totalorder %v625, %v953
        %vm988 = vcmp.eq.s32.totalorder %v625, %v964
        %vm989 = vcmp.eq.s32.totalorder %v625, %v975
        %vm990 = vcmp.eq.s32.totalorder %v625, %v986
        %vm991 = vcmp.eq.s32.totalorder %v626, %v953
        %vm992 = vcmp.eq.s32.totalorder %v626, %v964
        %vm993 = vcmp.eq.s32.totalorder %v626, %v975
        %vm994 = vcmp.eq.s32.totalorder %v626, %v986
        %v995 = vadd.f32 %v905, 1e-08
        %v996 = vadd.f32 %v912, 1e-08
        %v997 = vadd.f32 %v919, 1e-08
        %v998 = vadd.f32 %v926, 1e-08
        %v999 = vrcp.pop %v995
        %v1000 = vmul.f32 1.0, %v999
        %v1001 = vrcp.pop %v996
        %v1002 = vmul.f32 1.0, %v1001
        %v1003 = vrcp.pop %v997
        %v1004 = vmul.f32 1.0, %v1003
        %v1005 = vrcp.pop %v998
        %v1006 = vmul.f32 1.0, %v1005
        %v1007 = vsel %vm987, %v1000, 0.0
        %v1008 = vsel %vm988, %v1002, 0.0
        %v1009 = vsel %vm989, %v1004, 0.0
        %v1010 = vsel %vm990, %v1006, 0.0
        %v1011 = vsel %vm991, %v1000, 0.0
        %v1012 = vsel %vm992, %v1002, 0.0
        %v1013 = vsel %vm993, %v1004, 0.0
        %v1014 = vsel %vm994, %v1006, 0.0
        %v1015 = vadd.f32 %v879, %v1007
        %v1016 = vadd.f32 %v880, %v1008
        %v1017 = vadd.f32 %v881, %v1009
        %v1018 = vadd.f32 %v882, %v1010
        %v1019 = vadd.f32 %v883, %v1011
        %v1020 = vadd.f32 %v884, %v1012
        %v1021 = vadd.f32 %v885, %v1013
        %v1022 = vadd.f32 %v886, %v1014
        %v1023 = vadd.f32 %v887, %v1000
        %v1024 = vadd.f32 %v888, %v1002
        %v1025 = vadd.f32 %v889, %v1004
        %v1026 = vadd.f32 %v890, %v1006
        %v1027 = vrcp.pop %v1023
        %v1028 = vmul.f32 1.0, %v1027
        %v1029 = vrcp.pop %v1024
        %v1030 = vmul.f32 1.0, %v1029
        %v1031 = vrcp.pop %v1025
        %v1032 = vmul.f32 1.0, %v1031
        %v1033 = vrcp.pop %v1026
        %v1034 = vmul.f32 1.0, %v1033
        %v1035 = vmul.f32 %v1015, %v1028
        %v1036 = vmul.f32 %v1016, %v1030
        %v1037 = vmul.f32 %v1017, %v1032
        %v1038 = vmul.f32 %v1018, %v1034
        %v1039 = vmul.f32 %v1019, %v1028
        %v1040 = vmul.f32 %v1020, %v1030
        %v1041 = vmul.f32 %v1021, %v1032
        %v1042 = vmul.f32 %v1022, %v1034
        %v1043 = vld [vmem:[%s409] sm:$0xf]
        %v1044 = vld [vmem:[%s409 + $0x4] sm:$0xf]
        %v1045 = vld [vmem:[%s409 + $0x8] sm:$0xf]
        %v1046 = vld [vmem:[%s409 + $0xc] sm:$0xf]
        %v1047 = vld [vmem:[%s409 + $0x10] sm:$0xf]
        %v1048 = vld [vmem:[%s409 + $0x14] sm:$0xf]
        %v1049 = vld [vmem:[%s409 + $0x18] sm:$0xf]
        %v1050 = vld [vmem:[%s409 + $0x1c] sm:$0xf]
        %v1051 = vpack.c.bf16 %v1039, %v1035
        %v1052 = vpack.c.bf16 %v1040, %v1036
        %v1053 = vpack.c.bf16 %v1041, %v1037
        %v1054 = vpack.c.bf16 %v1042, %v1038
        %v1063 = vunpack.c.l.b16 %v1043
        %v1064 = vunpack.c.l.b16 %v1044
        %v1065 = vunpack.c.l.b16 %v1045
        %v1066 = vunpack.c.l.b16 %v1046
        %v1067 = vunpack.c.l.b16 %v1047
        %v1068 = vunpack.c.l.b16 %v1048
        %v1069 = vunpack.c.l.b16 %v1049
        %v1070 = vunpack.c.l.b16 %v1050
        %v1071 = vpack.c.b16 %v1064, %v1063
        %v1072 = vpack.c.b16 %v1066, %v1065
        %v1073 = vpack.c.b16 %v1068, %v1067
        %v1074 = vpack.c.b16 %v1070, %v1069
        %vm1075 = vcmask 130048
        %v1077 = vsel %vm1075, %v1071, 0
        %v1080 = vsel %vm1075, %v1072, 0
        %v1083 = vsel %vm1075, %v1073, 0
        %v1086 = vsel %vm1075, %v1074, 0
        %1088 = vmatprep.subr.bf16.mxu0 %v1052
        %1089 = vmatpush1.bf16.msra.mxu0 %v1051
        %1090 = vmatprep.subr.bf16.mxu0 0
        %1091 = vmatpush1.bf16.msra.mxu0 0
        %1092 = vmatprep.subr.bf16.mxu0 0
        %1093 = vmatpush1.bf16.msra.mxu0 0
        %1094 = vmatprep.subr.bf16.mxu0 0
        %1095 = vmatpush1.bf16.msra.mxu0 0
        %1096 = vmatprep.subr.bf16.mxu0 0
        %1097 = vmatpush1.bf16.msra.mxu0 0
        %1098 = vmatprep.subr.bf16.mxu0 0
        %1099 = vmatpush1.bf16.msra.mxu0 0
        %1100 = vmatprep.subr.bf16.mxu0 0
        %1101 = vmatpush1.bf16.msra.mxu0 0
        %1102 = vmatprep.subr.bf16.mxu0 0
        %1103 = vmatpush1.bf16.msra.mxu0 0
        %1104 = vmatprep.subr.bf16.mxu0 0
        %1105 = vmatpush1.bf16.msra.mxu0 0
        %1106 = vmatprep.subr.bf16.mxu0 0
        %1107 = vmatpush1.bf16.msra.mxu0 0
        %1108 = vmatprep.subr.bf16.mxu0 0
        %1109 = vmatpush1.bf16.msra.mxu0 0
        %1110 = vmatprep.subr.bf16.mxu0 0
        %1111 = vmatpush1.bf16.msra.mxu0 0
        %1112 = vmatprep.subr.bf16.mxu0 0
        %1113 = vmatpush1.bf16.msra.mxu0 0
        %1114 = vmatprep.subr.bf16.mxu0 0
        %1115 = vmatpush1.bf16.msra.mxu0 0
        %1116 = vmatprep.subr.bf16.mxu0 0
        %1117 = vmatpush1.bf16.msra.mxu0 0
        %1118 = vmatprep.subr.bf16.mxu0 0
        %1119 = vmatpush1.bf16.msra.mxu0 0
        %1120 = vmatprep.mubr.bf16.mxu0 0
        %1121 = vmatmul.mubr.bf16.gmra.mrb[0].mxu0 %v1077
        %v1122 = vpop.f32.mrb[0].mxu0
        %v1123 = vadd.f32 0.0, %v1122
        %v1124 = vpop.f32.mrb[0].mxu0
        %v1125 = vadd.f32 0.0, %v1124
        %v1126 = vpop.f32.mrb[0].mxu0
        %v1127 = vadd.f32 0.0, %v1126
        %v1128 = vpop.f32.mrb[0].mxu0
        %v1129 = vadd.f32 0.0, %v1128
        %1130 = vmatprep.mubr.bf16.mxu0 0
        %1131 = vmatmul.mubr.bf16.gmra.mrb[0].mxu0 %v1080
        %v1132 = vpop.f32.mrb[0].mxu0
        %v1133 = vadd.f32 0.0, %v1132
        %v1134 = vpop.f32.mrb[0].mxu0
        %v1135 = vadd.f32 0.0, %v1134
        %v1136 = vpop.f32.mrb[0].mxu0
        %v1137 = vadd.f32 0.0, %v1136
        %v1138 = vpop.f32.mrb[0].mxu0
        %v1139 = vadd.f32 0.0, %v1138
        %1140 = vmatprep.mubr.bf16.mxu0 0
        %1141 = vmatmul.mubr.bf16.gmra.mrb[0].mxu0 %v1083
        %v1142 = vpop.f32.mrb[0].mxu0
        %v1143 = vadd.f32 0.0, %v1142
        %v1144 = vpop.f32.mrb[0].mxu0
        %v1145 = vadd.f32 0.0, %v1144
        %v1146 = vpop.f32.mrb[0].mxu0
        %v1147 = vadd.f32 0.0, %v1146
        %v1148 = vpop.f32.mrb[0].mxu0
        %v1149 = vadd.f32 0.0, %v1148
        %1150 = vmatprep.mubr.bf16.mxu0 0
        %1151 = vmatmul.mubr.bf16.gmra.mrb[0].mxu0 %v1086
        %v1152 = vpop.f32.mrb[0].mxu0
        %v1153 = vadd.f32 0.0, %v1152
        %v1154 = vpop.f32.mrb[0].mxu0
        %v1155 = vadd.f32 0.0, %v1154
        %v1156 = vpop.f32.mrb[0].mxu0
        %v1157 = vadd.f32 0.0, %v1156
        %v1158 = vpop.f32.mrb[0].mxu0
        %v1159 = vadd.f32 0.0, %v1158
        %1160 = vdwg.mxu0
        %1161 = vmatprep.subr.bf16.mxu0 %v1054
        %1162 = vmatpush1.bf16.msra.mxu0 %v1053
        %1163 = vmatprep.subr.bf16.mxu0 0
        %1164 = vmatpush1.bf16.msra.mxu0 0
        %1165 = vmatprep.subr.bf16.mxu0 0
        %1166 = vmatpush1.bf16.msra.mxu0 0
        %1167 = vmatprep.subr.bf16.mxu0 0
        %1168 = vmatpush1.bf16.msra.mxu0 0
        %1169 = vmatprep.subr.bf16.mxu0 0
        %1170 = vmatpush1.bf16.msra.mxu0 0
        %1171 = vmatprep.subr.bf16.mxu0 0
        %1172 = vmatpush1.bf16.msra.mxu0 0
        %1173 = vmatprep.subr.bf16.mxu0 0
        %1174 = vmatpush1.bf16.msra.mxu0 0
        %1175 = vmatprep.subr.bf16.mxu0 0
        %1176 = vmatpush1.bf16.msra.mxu0 0
        %1177 = vmatprep.subr.bf16.mxu0 0
        %1178 = vmatpush1.bf16.msra.mxu0 0
        %1179 = vmatprep.subr.bf16.mxu0 0
        %1180 = vmatpush1.bf16.msra.mxu0 0
        %1181 = vmatprep.subr.bf16.mxu0 0
        %1182 = vmatpush1.bf16.msra.mxu0 0
        %1183 = vmatprep.subr.bf16.mxu0 0
        %1184 = vmatpush1.bf16.msra.mxu0 0
        %1185 = vmatprep.subr.bf16.mxu0 0
        %1186 = vmatpush1.bf16.msra.mxu0 0
        %1187 = vmatprep.subr.bf16.mxu0 0
        %1188 = vmatpush1.bf16.msra.mxu0 0
        %1189 = vmatprep.subr.bf16.mxu0 0
        %1190 = vmatpush1.bf16.msra.mxu0 0
        %1191 = vmatprep.subr.bf16.mxu0 0
        %1192 = vmatpush1.bf16.msra.mxu0 0
        %1193 = vmatprep.mubr.bf16.mxu0 0
        %1194 = vmatmul.mubr.bf16.gmra.mrb[0].mxu0 %v1077
        %v1195 = vpop.f32.mrb[0].mxu0
        %v1196 = vadd.f32 0.0, %v1195
        %v1197 = vpop.f32.mrb[0].mxu0
        %v1198 = vadd.f32 0.0, %v1197
        %v1199 = vpop.f32.mrb[0].mxu0
        %v1200 = vadd.f32 0.0, %v1199
        %v1201 = vpop.f32.mrb[0].mxu0
        %v1202 = vadd.f32 0.0, %v1201
        %1203 = vmatprep.mubr.bf16.mxu0 0
        %1204 = vmatmul.mubr.bf16.gmra.mrb[0].mxu0 %v1080
        %v1205 = vpop.f32.mrb[0].mxu0
        %v1206 = vadd.f32 0.0, %v1205
        %v1207 = vpop.f32.mrb[0].mxu0
        %v1208 = vadd.f32 0.0, %v1207
        %v1209 = vpop.f32.mrb[0].mxu0
        %v1210 = vadd.f32 0.0, %v1209
        %v1211 = vpop.f32.mrb[0].mxu0
        %v1212 = vadd.f32 0.0, %v1211
        %1213 = vmatprep.mubr.bf16.mxu0 0
        %1214 = vmatmul.mubr.bf16.gmra.mrb[0].mxu0 %v1083
        %v1215 = vpop.f32.mrb[0].mxu0
        %v1216 = vadd.f32 0.0, %v1215
        %v1217 = vpop.f32.mrb[0].mxu0
        %v1218 = vadd.f32 0.0, %v1217
        %v1219 = vpop.f32.mrb[0].mxu0
        %v1220 = vadd.f32 0.0, %v1219
        %v1221 = vpop.f32.mrb[0].mxu0
        %v1222 = vadd.f32 0.0, %v1221
        %1223 = vmatprep.mubr.bf16.mxu0 0
        %1224 = vmatmul.mubr.bf16.gmra.mrb[0].mxu0 %v1086
        %v1225 = vpop.f32.mrb[0].mxu0
        %v1226 = vadd.f32 0.0, %v1225
        %v1227 = vpop.f32.mrb[0].mxu0
        %v1228 = vadd.f32 0.0, %v1227
        %v1229 = vpop.f32.mrb[0].mxu0
        %v1230 = vadd.f32 0.0, %v1229
        %v1231 = vpop.f32.mrb[0].mxu0
        %v1232 = vadd.f32 0.0, %v1231
        %1233 = vdwg.mxu0
        %v1234 = vld [vmem:[%s4] sm:$0xf]
        %v1235 = vld [vmem:[%s4 + $0x4] sm:$0xf]
        %v1236 = vld [vmem:[%s4 + $0x8] sm:$0xf]
        %v1237 = vld [vmem:[%s4 + $0xc] sm:$0xf]
        %v1238 = vld [vmem:[%s4 + $0x10] sm:$0xf]
        %v1239 = vld [vmem:[%s4 + $0x14] sm:$0xf]
        %v1240 = vld [vmem:[%s4 + $0x18] sm:$0xf]
        %v1241 = vld [vmem:[%s4 + $0x1c] sm:$0xf]
        %v1242 = vld [vmem:[%s403] sm:$0xff]
        %v1243 = vld [vmem:[%s403 + $0x8] sm:$0xff]
        %v1244 = vld [vmem:[%s403 + $0x10] sm:$0xff]
        %v1245 = vld [vmem:[%s403 + $0x18] sm:$0xff]
        %v1254 = vunpack.c.l.b16 %v1234
        %v1255 = vunpack.c.l.b16 %v1235
        %v1256 = vunpack.c.l.b16 %v1236
        %v1257 = vunpack.c.l.b16 %v1237
        %v1258 = vunpack.c.l.b16 %v1238
        %v1259 = vunpack.c.l.b16 %v1239
        %v1260 = vunpack.c.l.b16 %v1240
        %v1261 = vunpack.c.l.b16 %v1241
        %v1262 = vpack.c.b16 %v1255, %v1254
        %v1263 = vpack.c.b16 %v1257, %v1256
        %v1264 = vpack.c.b16 %v1259, %v1258
        %v1265 = vpack.c.b16 %v1261, %v1260
        %v1270 = vunpack.c.l.b16 %v1242
        %v1271 = vunpack.c.h.b16 %v1242
        %v1272 = vunpack.c.l.b16 %v1243
        %v1273 = vunpack.c.h.b16 %v1243
        %v1274 = vunpack.c.l.b16 %v1244
        %v1275 = vunpack.c.h.b16 %v1244
        %v1276 = vunpack.c.l.b16 %v1245
        %v1277 = vunpack.c.h.b16 %v1245
        %v1278 = vpack.c.b16 %v1274, %v1270
        %v1279 = vpack.c.b16 %v1275, %v1271
        %v1280 = vpack.c.b16 %v1276, %v1272
        %v1281 = vpack.c.b16 %v1277, %v1273
        %v1287 = vsel %vm1075, %v1262, 0
        %v1290 = vsel %vm1075, %v1263, 0
        %v1293 = vsel %vm1075, %v1264, 0
        %v1296 = vsel %vm1075, %v1265, 0
        %1298 = vmatprep.subr.bf16.mxu0 %v1279
        %1299 = vmatpush1.bf16.msra.mxu0 %v1278
        %1300 = vmatprep.subr.bf16.mxu0 0
        %1301 = vmatpush1.bf16.msra.mxu0 0
        %1302 = vmatprep.subr.bf16.mxu0 0
        %1303 = vmatpush1.bf16.msra.mxu0 0
        %1304 = vmatprep.subr.bf16.mxu0 0
        %1305 = vmatpush1.bf16.msra.mxu0 0
        %1306 = vmatprep.subr.bf16.mxu0 0
        %1307 = vmatpush1.bf16.msra.mxu0 0
        %1308 = vmatprep.subr.bf16.mxu0 0
        %1309 = vmatpush1.bf16.msra.mxu0 0
        %1310 = vmatprep.subr.bf16.mxu0 0
        %1311 = vmatpush1.bf16.msra.mxu0 0
        %1312 = vmatprep.subr.bf16.mxu0 0
        %1313 = vmatpush1.bf16.msra.mxu0 0
        %1314 = vmatprep.subr.bf16.mxu0 0
        %1315 = vmatpush1.bf16.msra.mxu0 0
        %1316 = vmatprep.subr.bf16.mxu0 0
        %1317 = vmatpush1.bf16.msra.mxu0 0
        %1318 = vmatprep.subr.bf16.mxu0 0
        %1319 = vmatpush1.bf16.msra.mxu0 0
        %1320 = vmatprep.subr.bf16.mxu0 0
        %1321 = vmatpush1.bf16.msra.mxu0 0
        %1322 = vmatprep.subr.bf16.mxu0 0
        %1323 = vmatpush1.bf16.msra.mxu0 0
        %1324 = vmatprep.subr.bf16.mxu0 0
        %1325 = vmatpush1.bf16.msra.mxu0 0
        %1326 = vmatprep.subr.bf16.mxu0 0
        %1327 = vmatpush1.bf16.msra.mxu0 0
        %1328 = vmatprep.subr.bf16.mxu0 0
        %1329 = vmatpush1.bf16.msra.mxu0 0
        %1330 = vmatprep.mubr.bf16.mxu0 0
        %1331 = vmatmul.mubr.bf16.gmra.mrb[0].mxu0 %v1287
        %v1332 = vpop.f32.mrb[0].mxu0
        %v1333 = vadd.f32 %v1123, %v1332
        %v1334 = vpop.f32.mrb[0].mxu0
        %v1335 = vadd.f32 %v1125, %v1334
        %v1336 = vpop.f32.mrb[0].mxu0
        %v1337 = vadd.f32 %v1127, %v1336
        %v1338 = vpop.f32.mrb[0].mxu0
        %v1339 = vadd.f32 %v1129, %v1338
        %1340 = vmatprep.mubr.bf16.mxu0 0
        %1341 = vmatmul.mubr.bf16.gmra.mrb[0].mxu0 %v1290
        %v1342 = vpop.f32.mrb[0].mxu0
        %v1343 = vadd.f32 %v1133, %v1342
        %v1344 = vpop.f32.mrb[0].mxu0
        %v1345 = vadd.f32 %v1135, %v1344
        %v1346 = vpop.f32.mrb[0].mxu0
        %v1347 = vadd.f32 %v1137, %v1346
        %v1348 = vpop.f32.mrb[0].mxu0
        %v1349 = vadd.f32 %v1139, %v1348
        %1350 = vmatprep.mubr.bf16.mxu0 0
        %1351 = vmatmul.mubr.bf16.gmra.mrb[0].mxu0 %v1293
        %v1352 = vpop.f32.mrb[0].mxu0
        %v1353 = vadd.f32 %v1143, %v1352
        %v1354 = vpop.f32.mrb[0].mxu0
        %v1355 = vadd.f32 %v1145, %v1354
        %v1356 = vpop.f32.mrb[0].mxu0
        %v1357 = vadd.f32 %v1147, %v1356
        %v1358 = vpop.f32.mrb[0].mxu0
        %v1359 = vadd.f32 %v1149, %v1358
        %1360 = vmatprep.mubr.bf16.mxu0 0
        %1361 = vmatmul.mubr.bf16.gmra.mrb[0].mxu0 %v1296
        %v1362 = vpop.f32.mrb[0].mxu0
        %v1363 = vadd.f32 %v1153, %v1362
        %v1364 = vpop.f32.mrb[0].mxu0
        %v1365 = vadd.f32 %v1155, %v1364
        %v1366 = vpop.f32.mrb[0].mxu0
        %v1367 = vadd.f32 %v1157, %v1366
        %v1368 = vpop.f32.mrb[0].mxu0
        %v1369 = vadd.f32 %v1159, %v1368
        %1370 = vdwg.mxu0
        %1371 = vmatprep.subr.bf16.mxu0 %v1281
        %1372 = vmatpush1.bf16.msra.mxu0 %v1280
        %1373 = vmatprep.subr.bf16.mxu0 0
        %1374 = vmatpush1.bf16.msra.mxu0 0
        %1375 = vmatprep.subr.bf16.mxu0 0
        %1376 = vmatpush1.bf16.msra.mxu0 0
        %1377 = vmatprep.subr.bf16.mxu0 0
        %1378 = vmatpush1.bf16.msra.mxu0 0
        %1379 = vmatprep.subr.bf16.mxu0 0
        %1380 = vmatpush1.bf16.msra.mxu0 0
        %1381 = vmatprep.subr.bf16.mxu0 0
        %1382 = vmatpush1.bf16.msra.mxu0 0
        %1383 = vmatprep.subr.bf16.mxu0 0
        %1384 = vmatpush1.bf16.msra.mxu0 0
        %1385 = vmatprep.subr.bf16.mxu0 0
        %1386 = vmatpush1.bf16.msra.mxu0 0
        %1387 = vmatprep.subr.bf16.mxu0 0
        %1388 = vmatpush1.bf16.msra.mxu0 0
        %1389 = vmatprep.subr.bf16.mxu0 0
        %1390 = vmatpush1.bf16.msra.mxu0 0
        %1391 = vmatprep.subr.bf16.mxu0 0
        %1392 = vmatpush1.bf16.msra.mxu0 0
        %1393 = vmatprep.subr.bf16.mxu0 0
        %1394 = vmatpush1.bf16.msra.mxu0 0
        %1395 = vmatprep.subr.bf16.mxu0 0
        %1396 = vmatpush1.bf16.msra.mxu0 0
        %1397 = vmatprep.subr.bf16.mxu0 0
        %1398 = vmatpush1.bf16.msra.mxu0 0
        %1399 = vmatprep.subr.bf16.mxu0 0
        %1400 = vmatpush1.bf16.msra.mxu0 0
        %1401 = vmatprep.subr.bf16.mxu0 0
        %1402 = vmatpush1.bf16.msra.mxu0 0
        %1403 = vmatprep.mubr.bf16.mxu0 0
        %1404 = vmatmul.mubr.bf16.gmra.mrb[0].mxu0 %v1287
        %v1405 = vpop.f32.mrb[0].mxu0
        %v1406 = vadd.f32 %v1196, %v1405
        %v1407 = vpop.f32.mrb[0].mxu0
        %v1408 = vadd.f32 %v1198, %v1407
        %v1409 = vpop.f32.mrb[0].mxu0
        %v1410 = vadd.f32 %v1200, %v1409
        %v1411 = vpop.f32.mrb[0].mxu0
        %v1412 = vadd.f32 %v1202, %v1411
        %1413 = vmatprep.mubr.bf16.mxu0 0
        %1414 = vmatmul.mubr.bf16.gmra.mrb[0].mxu0 %v1290
        %v1415 = vpop.f32.mrb[0].mxu0
        %v1416 = vadd.f32 %v1206, %v1415
        %v1417 = vpop.f32.mrb[0].mxu0
        %v1418 = vadd.f32 %v1208, %v1417
        %v1419 = vpop.f32.mrb[0].mxu0
        %v1420 = vadd.f32 %v1210, %v1419
        %v1421 = vpop.f32.mrb[0].mxu0
        %v1422 = vadd.f32 %v1212, %v1421
        %1423 = vmatprep.mubr.bf16.mxu0 0
        %1424 = vmatmul.mubr.bf16.gmra.mrb[0].mxu0 %v1293
        %v1425 = vpop.f32.mrb[0].mxu0
        %v1426 = vadd.f32 %v1216, %v1425
        %v1427 = vpop.f32.mrb[0].mxu0
        %v1428 = vadd.f32 %v1218, %v1427
        %v1429 = vpop.f32.mrb[0].mxu0
        %v1430 = vadd.f32 %v1220, %v1429
        %v1431 = vpop.f32.mrb[0].mxu0
        %v1432 = vadd.f32 %v1222, %v1431
        %1433 = vmatprep.mubr.bf16.mxu0 0
        %1434 = vmatmul.mubr.bf16.gmra.mrb[0].mxu0 %v1296
        %v1435 = vpop.f32.mrb[0].mxu0
        %v1436 = vadd.f32 %v1226, %v1435
        %v1437 = vpop.f32.mrb[0].mxu0
        %v1438 = vadd.f32 %v1228, %v1437
        %v1439 = vpop.f32.mrb[0].mxu0
        %v1440 = vadd.f32 %v1230, %v1439
        %v1441 = vpop.f32.mrb[0].mxu0
        %v1442 = vadd.f32 %v1232, %v1441
        %1443 = vdwg.mxu0
        %v1444 = vld [vmem:[%s5] sm:$0xff]
        %v1445 = vld [vmem:[%s5 + $0x8] sm:$0xff]
        %v1446 = vld [vmem:[%s5 + $0x10] sm:$0xff]
        %v1447 = vld [vmem:[%s5 + $0x18] sm:$0xff]
        %v1448 = vld [vmem:[%s5 + $0x20] sm:$0xff]
        %v1449 = vld [vmem:[%s5 + $0x28] sm:$0xff]
        %v1450 = vld [vmem:[%s5 + $0x30] sm:$0xff]
        %v1451 = vld [vmem:[%s5 + $0x38] sm:$0xff]
        %1453 = vset.pattern.permute.xlu0 0
        %1454 = vperm.xlu0 %1453, %v1444
        %v1455 = vpop.permute.xlu0 %1454
        %1458 = vset.pattern.permute.xlu0 0
        %1459 = vperm.xlu0 %1458, %v1445
        %v1460 = vpop.permute.xlu0 %1459
        %1463 = vset.pattern.permute.xlu0 0
        %1464 = vperm.xlu0 %1463, %v1446
        %v1465 = vpop.permute.xlu0 %1464
        %1468 = vset.pattern.permute.xlu0 0
        %1469 = vperm.xlu0 %1468, %v1447
        %v1470 = vpop.permute.xlu0 %1469
        %1473 = vset.pattern.permute.xlu0 0
        %1474 = vperm.xlu0 %1473, %v1448
        %v1475 = vpop.permute.xlu0 %1474
        %1478 = vset.pattern.permute.xlu0 0
        %1479 = vperm.xlu0 %1478, %v1449
        %v1480 = vpop.permute.xlu0 %1479
        %1483 = vset.pattern.permute.xlu0 0
        %1484 = vperm.xlu0 %1483, %v1450
        %v1485 = vpop.permute.xlu0 %1484
        %1488 = vset.pattern.permute.xlu0 0
        %1489 = vperm.xlu0 %1488, %v1451
        %v1490 = vpop.permute.xlu0 %1489
        %v1492 = vadd.f32 %v1333, %v1455
        %v1493 = vadd.f32 %v1335, %v1455
        %v1494 = vadd.f32 %v1406, %v1455
        %v1495 = vadd.f32 %v1408, %v1455
        %v1496 = vadd.f32 %v1337, %v1460
        %v1497 = vadd.f32 %v1339, %v1460
        %v1498 = vadd.f32 %v1410, %v1460
        %v1499 = vadd.f32 %v1412, %v1460
        %v1500 = vadd.f32 %v1343, %v1465
        %v1501 = vadd.f32 %v1345, %v1465
        %v1502 = vadd.f32 %v1416, %v1465
        %v1503 = vadd.f32 %v1418, %v1465
        %v1504 = vadd.f32 %v1347, %v1470
        %v1505 = vadd.f32 %v1349, %v1470
        %v1506 = vadd.f32 %v1420, %v1470
        %v1507 = vadd.f32 %v1422, %v1470
        %v1508 = vadd.f32 %v1353, %v1475
        %v1509 = vadd.f32 %v1355, %v1475
        %v1510 = vadd.f32 %v1426, %v1475
        %v1511 = vadd.f32 %v1428, %v1475
        %v1512 = vadd.f32 %v1357, %v1480
        %v1513 = vadd.f32 %v1359, %v1480
        %v1514 = vadd.f32 %v1430, %v1480
        %v1515 = vadd.f32 %v1432, %v1480
        %v1516 = vadd.f32 %v1363, %v1485
        %v1517 = vadd.f32 %v1365, %v1485
        %v1518 = vadd.f32 %v1436, %v1485
        %v1519 = vadd.f32 %v1438, %v1485
        %v1520 = vadd.f32 %v1367, %v1490
        %v1521 = vadd.f32 %v1369, %v1490
        %v1522 = vadd.f32 %v1440, %v1490
        %v1523 = vadd.f32 %v1442, %v1490
        %v1524 = vmax.f32 %v1492, 0.0
        %v1525 = vmax.f32 %v1493, 0.0
        %v1526 = vmax.f32 %v1494, 0.0
        %v1527 = vmax.f32 %v1495, 0.0
        %v1528 = vmax.f32 %v1496, 0.0
        %v1529 = vmax.f32 %v1497, 0.0
        %v1530 = vmax.f32 %v1498, 0.0
        %v1531 = vmax.f32 %v1499, 0.0
        %v1532 = vmax.f32 %v1500, 0.0
        %v1533 = vmax.f32 %v1501, 0.0
        %v1534 = vmax.f32 %v1502, 0.0
        %v1535 = vmax.f32 %v1503, 0.0
        %v1536 = vmax.f32 %v1504, 0.0
        %v1537 = vmax.f32 %v1505, 0.0
        %v1538 = vmax.f32 %v1506, 0.0
        %v1539 = vmax.f32 %v1507, 0.0
        %v1540 = vmax.f32 %v1508, 0.0
        %v1541 = vmax.f32 %v1509, 0.0
        %v1542 = vmax.f32 %v1510, 0.0
        %v1543 = vmax.f32 %v1511, 0.0
        %v1544 = vmax.f32 %v1512, 0.0
        %v1545 = vmax.f32 %v1513, 0.0
        %v1546 = vmax.f32 %v1514, 0.0
        %v1547 = vmax.f32 %v1515, 0.0
        %v1548 = vmax.f32 %v1516, 0.0
        %v1549 = vmax.f32 %v1517, 0.0
        %v1550 = vmax.f32 %v1518, 0.0
        %v1551 = vmax.f32 %v1519, 0.0
        %v1552 = vmax.f32 %v1520, 0.0
        %v1553 = vmax.f32 %v1521, 0.0
        %v1554 = vmax.f32 %v1522, 0.0
        %v1555 = vmax.f32 %v1523, 0.0
        %v1556 = vld [vmem:[%s6] sm:$0xf]
        %v1557 = vld [vmem:[%s6 + $0x4] sm:$0xf]
        %v1558 = vld [vmem:[%s6 + $0x8] sm:$0xf]
        %v1559 = vld [vmem:[%s6 + $0xc] sm:$0xf]
        %v1560 = vld [vmem:[%s7] sm:$0xff]
        %v1561 = vld [vmem:[%s7 + $0x8] sm:$0xff]
        %v1562 = vld [vmem:[%s7 + $0x10] sm:$0xff]
        %v1563 = vld [vmem:[%s7 + $0x18] sm:$0xff]
        %v1564 = vpack.c.bf16 %v1528, %v1524
        %v1565 = vpack.c.bf16 %v1529, %v1525
        %v1566 = vpack.c.bf16 %v1530, %v1526
        %v1567 = vpack.c.bf16 %v1531, %v1527
        %v1568 = vpack.c.bf16 %v1536, %v1532
        %v1569 = vpack.c.bf16 %v1537, %v1533
        %v1570 = vpack.c.bf16 %v1538, %v1534
        %v1571 = vpack.c.bf16 %v1539, %v1535
        %v1572 = vpack.c.bf16 %v1544, %v1540
        %v1573 = vpack.c.bf16 %v1545, %v1541
        %v1574 = vpack.c.bf16 %v1546, %v1542
        %v1575 = vpack.c.bf16 %v1547, %v1543
        %v1576 = vpack.c.bf16 %v1552, %v1548
        %v1577 = vpack.c.bf16 %v1553, %v1549
        %v1578 = vpack.c.bf16 %v1554, %v1550
        %v1579 = vpack.c.bf16 %v1555, %v1551
        %1581 = vset.pattern.permute.xlu0 0
        %1582 = vperm.xlu0 %1581, %v1560
        %v1583 = vpop.permute.xlu0 %1582
        %1586 = vset.pattern.permute.xlu0 0
        %1587 = vperm.xlu0 %1586, %v1561
        %v1588 = vpop.permute.xlu0 %1587
        %1591 = vset.pattern.permute.xlu0 0
        %1592 = vperm.xlu0 %1591, %v1562
        %v1593 = vpop.permute.xlu0 %1592
        %1596 = vset.pattern.permute.xlu0 0
        %1597 = vperm.xlu0 %1596, %v1563
        %v1598 = vpop.permute.xlu0 %1597
        %v1604 = vunpack.c.l.b16 %v1556
        %v1605 = vunpack.c.l.b16 %v1557
        %v1606 = vunpack.c.l.b16 %v1558
        %v1607 = vunpack.c.l.b16 %v1559
        %v1608 = vpack.c.b16 %v1605, %v1604
        %v1609 = vpack.c.b16 %v1607, %v1606
        %vm1610 = vcmask 523264
        %v1612 = vsel %vm1610, %v1608, 0
        %v1615 = vsel %vm1610, %v1609, 0
        %1617 = vmatprep.subr.bf16.mxu0 %v1565
        %1618 = vmatpush1.bf16.msra.mxu0 %v1564
        %1619 = vmatprep.subr.bf16.mxu0 %v1569
        %1620 = vmatpush1.bf16.msra.mxu0 %v1568
        %1621 = vmatprep.subr.bf16.mxu0 %v1573
        %1622 = vmatpush1.bf16.msra.mxu0 %v1572
        %1623 = vmatprep.subr.bf16.mxu0 %v1577
        %1624 = vmatpush1.bf16.msra.mxu0 %v1576
        %1625 = vmatprep.subr.bf16.mxu0 0
        %1626 = vmatpush1.bf16.msra.mxu0 0
        %1627 = vmatprep.subr.bf16.mxu0 0
        %1628 = vmatpush1.bf16.msra.mxu0 0
        %1629 = vmatprep.subr.bf16.mxu0 0
        %1630 = vmatpush1.bf16.msra.mxu0 0
        %1631 = vmatprep.subr.bf16.mxu0 0
        %1632 = vmatpush1.bf16.msra.mxu0 0
        %1633 = vmatprep.subr.bf16.mxu0 0
        %1634 = vmatpush1.bf16.msra.mxu0 0
        %1635 = vmatprep.subr.bf16.mxu0 0
        %1636 = vmatpush1.bf16.msra.mxu0 0
        %1637 = vmatprep.subr.bf16.mxu0 0
        %1638 = vmatpush1.bf16.msra.mxu0 0
        %1639 = vmatprep.subr.bf16.mxu0 0
        %1640 = vmatpush1.bf16.msra.mxu0 0
        %1641 = vmatprep.subr.bf16.mxu0 0
        %1642 = vmatpush1.bf16.msra.mxu0 0
        %1643 = vmatprep.subr.bf16.mxu0 0
        %1644 = vmatpush1.bf16.msra.mxu0 0
        %1645 = vmatprep.subr.bf16.mxu0 0
        %1646 = vmatpush1.bf16.msra.mxu0 0
        %1647 = vmatprep.subr.bf16.mxu0 0
        %1648 = vmatpush1.bf16.msra.mxu0 0
        %1649 = vmatprep.mubr.bf16.mxu0 0
        %1650 = vmatmul.mubr.bf16.gmra.mrb[0].mxu0 %v1612
        %v1651 = vpop.f32.mrb[0].mxu0
        %v1652 = vadd.f32 %v1583, %v1651
        %v1653 = vpop.f32.mrb[0].mxu0
        %v1654 = vadd.f32 %v1583, %v1653
        %v1655 = vpop.f32.mrb[0].mxu0
        %v1656 = vadd.f32 %v1588, %v1655
        %v1657 = vpop.f32.mrb[0].mxu0
        %v1658 = vadd.f32 %v1588, %v1657
        %1659 = vmatprep.mubr.bf16.mxu0 0
        %1660 = vmatmul.mubr.bf16.gmra.mrb[0].mxu0 %v1615
        %v1661 = vpop.f32.mrb[0].mxu0
        %v1662 = vadd.f32 %v1593, %v1661
        %v1663 = vpop.f32.mrb[0].mxu0
        %v1664 = vadd.f32 %v1593, %v1663
        %v1665 = vpop.f32.mrb[0].mxu0
        %v1666 = vadd.f32 %v1598, %v1665
        %v1667 = vpop.f32.mrb[0].mxu0
        %v1668 = vadd.f32 %v1598, %v1667
        %1669 = vdwg.mxu0
        %1670 = vmatprep.subr.bf16.mxu0 %v1567
        %1671 = vmatpush1.bf16.msra.mxu0 %v1566
        %1672 = vmatprep.subr.bf16.mxu0 %v1571
        %1673 = vmatpush1.bf16.msra.mxu0 %v1570
        %1674 = vmatprep.subr.bf16.mxu0 %v1575
        %1675 = vmatpush1.bf16.msra.mxu0 %v1574
        %1676 = vmatprep.subr.bf16.mxu0 %v1579
        %1677 = vmatpush1.bf16.msra.mxu0 %v1578
        %1678 = vmatprep.subr.bf16.mxu0 0
        %1679 = vmatpush1.bf16.msra.mxu0 0
        %1680 = vmatprep.subr.bf16.mxu0 0
        %1681 = vmatpush1.bf16.msra.mxu0 0
        %1682 = vmatprep.subr.bf16.mxu0 0
        %1683 = vmatpush1.bf16.msra.mxu0 0
        %1684 = vmatprep.subr.bf16.mxu0 0
        %1685 = vmatpush1.bf16.msra.mxu0 0
        %1686 = vmatprep.subr.bf16.mxu0 0
        %1687 = vmatpush1.bf16.msra.mxu0 0
        %1688 = vmatprep.subr.bf16.mxu0 0
        %1689 = vmatpush1.bf16.msra.mxu0 0
        %1690 = vmatprep.subr.bf16.mxu0 0
        %1691 = vmatpush1.bf16.msra.mxu0 0
        %1692 = vmatprep.subr.bf16.mxu0 0
        %1693 = vmatpush1.bf16.msra.mxu0 0
        %1694 = vmatprep.subr.bf16.mxu0 0
        %1695 = vmatpush1.bf16.msra.mxu0 0
        %1696 = vmatprep.subr.bf16.mxu0 0
        %1697 = vmatpush1.bf16.msra.mxu0 0
        %1698 = vmatprep.subr.bf16.mxu0 0
        %1699 = vmatpush1.bf16.msra.mxu0 0
        %1700 = vmatprep.subr.bf16.mxu0 0
        %1701 = vmatpush1.bf16.msra.mxu0 0
        %1702 = vmatprep.mubr.bf16.mxu0 0
        %1703 = vmatmul.mubr.bf16.gmra.mrb[0].mxu0 %v1612
        %v1704 = vpop.f32.mrb[0].mxu0
        %v1705 = vadd.f32 %v1583, %v1704
        %v1706 = vpop.f32.mrb[0].mxu0
        %v1707 = vadd.f32 %v1583, %v1706
        %v1708 = vpop.f32.mrb[0].mxu0
        %v1709 = vadd.f32 %v1588, %v1708
        %v1710 = vpop.f32.mrb[0].mxu0
        %v1711 = vadd.f32 %v1588, %v1710
        %1712 = vmatprep.mubr.bf16.mxu0 0
        %1713 = vmatmul.mubr.bf16.gmra.mrb[0].mxu0 %v1615
        %v1714 = vpop.f32.mrb[0].mxu0
        %v1715 = vadd.f32 %v1593, %v1714
        %v1716 = vpop.f32.mrb[0].mxu0
        %v1717 = vadd.f32 %v1593, %v1716
        %v1718 = vpop.f32.mrb[0].mxu0
        %v1719 = vadd.f32 %v1598, %v1718
        %v1720 = vpop.f32.mrb[0].mxu0
        %v1721 = vadd.f32 %v1598, %v1720
        %1722 = vdwg.mxu0
        %v1723 = vmax.f32 %v1652, 0.0
        %v1724 = vmax.f32 %v1654, 0.0
        %v1725 = vmax.f32 %v1705, 0.0
        %v1726 = vmax.f32 %v1707, 0.0
        %v1727 = vmax.f32 %v1656, 0.0
        %v1728 = vmax.f32 %v1658, 0.0
        %v1729 = vmax.f32 %v1709, 0.0
        %v1730 = vmax.f32 %v1711, 0.0
        %v1731 = vmax.f32 %v1662, 0.0
        %v1732 = vmax.f32 %v1664, 0.0
        %v1733 = vmax.f32 %v1715, 0.0
        %v1734 = vmax.f32 %v1717, 0.0
        %v1735 = vmax.f32 %v1666, 0.0
        %v1736 = vmax.f32 %v1668, 0.0
        %v1737 = vmax.f32 %v1719, 0.0
        %v1738 = vmax.f32 %v1721, 0.0
        %v1739 = vpack.c.bf16 %v1727, %v1723
        %v1740 = vpack.c.bf16 %v1728, %v1724
        %v1741 = vpack.c.bf16 %v1729, %v1725
        %v1742 = vpack.c.bf16 %v1730, %v1726
        %v1743 = vpack.c.bf16 %v1735, %v1731
        %v1744 = vpack.c.bf16 %v1736, %v1732
        %v1745 = vpack.c.bf16 %v1737, %v1733
        %v1746 = vpack.c.bf16 %v1738, %v1734
        %v1755 = vunpack.c.l.b16 %v1739
        %v1756 = vunpack.c.l.b16 %v1740
        %v1757 = vunpack.c.l.b16 %v1741
        %v1758 = vunpack.c.l.b16 %v1742
        %v1759 = vunpack.c.h.b16 %v1739
        %v1760 = vunpack.c.h.b16 %v1740
        %v1761 = vunpack.c.h.b16 %v1741
        %v1762 = vunpack.c.h.b16 %v1742
        %v1763 = vunpack.c.l.b16 %v1743
        %v1764 = vunpack.c.l.b16 %v1744
        %v1765 = vunpack.c.l.b16 %v1745
        %v1766 = vunpack.c.l.b16 %v1746
        %v1767 = vunpack.c.h.b16 %v1743
        %v1768 = vunpack.c.h.b16 %v1744
        %v1769 = vunpack.c.h.b16 %v1745
        %v1770 = vunpack.c.h.b16 %v1746
        %v1771 = vpack.c.b16 %v1756, %v1755
        %v1772 = vpack.c.b16 %v1758, %v1757
        %v1773 = vpack.c.b16 %v1760, %v1759
        %v1774 = vpack.c.b16 %v1762, %v1761
        %v1775 = vpack.c.b16 %v1764, %v1763
        %v1776 = vpack.c.b16 %v1766, %v1765
        %v1777 = vpack.c.b16 %v1768, %v1767
        %v1778 = vpack.c.b16 %v1770, %v1769
        %1787 = vst [vmem:[%s379] sm:$0xff] %v1771
        %1788 = vst [vmem:[%s379 + $0x8] sm:$0xff] %v1772
        %1789 = vst [vmem:[%s379 + $0x10] sm:$0xff] %v1773
        %1790 = vst [vmem:[%s379 + $0x18] sm:$0xff] %v1774
        %1791 = vst [vmem:[%s379 + $0x20] sm:$0xff] %v1775
        %1792 = vst [vmem:[%s379 + $0x28] sm:$0xff] %v1776
        %1793 = vst [vmem:[%s379 + $0x30] sm:$0xff] %v1777
        %1794 = vst [vmem:[%s379 + $0x38] sm:$0xff] %v1778
        %s1795 = sand.u32 %s236, 1
        %s1796 = scalar_lea.sflag [#allocation3], %s1795
        %s1797 = sand.u32 %s236, 1
        %s1798 = smul.addr %s1797, 64
        %s1799 = scalar_lea.vmem [#allocation2], %s1798
        // Predicated region
        $region53: #{a_call__.1} parent=51 // pred_check
          %p1800 = pneg %p246
        $region54: #{a_call__.1} parent=51 // pred_check_branch
          %1802 = sbr.rel (%p1800) target = $region56
        $region55: #{a_call__.1} parent=51 // pred_region
          %s1803 = smul.u32 4, %s27
          %s1805 = ssub.s32 1024, 1024
          %1806 = vsyncadd %s1796, %s1805
          %s1807 = smul.addr %s26, 16
          %s1808 = sadd.s32 %s1803, %s1807
          %s1809 = smul.addr %s1808, 64
          %s1810 = scalar_lea.hbm %s8, %s1809
          %s1811 = sshll.u32 %s1799, 4
          %s1812 = int_to_ptr.vmem [resolvable:$true] %s1811
          %1817 = dma.vmem_to_hbm [thread:$0]  %s1812, 1024, %s1810, %s1796, 256, 256, 16
        $region56: #{a_call__.1} parent=51 // pred_fallthru
          _
      $region52: #{a_call__.1} parent=5 // pred_fallthru
        _
      %p1818 = scmp.le.s32.totalorder 2, %s17
      // Predicated region
      $region57: #{a_call__.1} parent=5 // pred_check
        %p1819 = pneg %p1818
      $region58: #{a_call__.1} parent=5 // pred_check_branch
        %1821 = sbr.rel (%p1819) target = $region60
      $region59: #{a_call__.1} parent=5 // pred_region
        %s1822 = ssub.s32 %s17, 2
        // Predicated region
        $region61: #{a_call__.1} parent=59 // pred_check
          %p1823 = pneg %p252
        $region62: #{a_call__.1} parent=59 // pred_check_branch
          %1825 = sbr.rel (%p1823) target = $region64
        $region63: #{a_call__.1} parent=59 // pred_region
          %s1826 = sand.u32 %s237, 1
          %s1827 = scalar_lea.sflag [#allocation3], %s1826
          %s1828 = sand.u32 %s237, 1
          %s1829 = smul.addr %s1828, 64
          %s1830 = scalar_lea.vmem [#allocation2], %s1829
          %1831 = dma.done %s1827, 1024
        $region64: #{a_call__.1} parent=59 // pred_fallthru
          _
      $region60: #{a_call__.1} parent=5 // pred_fallthru
        _
    $region6: #{a_call__.1} parent=1 // loop_footer
      %s21 = sadd.s32 1, %s17
    $region7: #{a_call__.1} parent=1 // loop_footer_branch
      %16 = sbr.rel target = $region3
    $region8: #{a_call__.1} parent=1 // loop_exit
      _
    %1832 = vsyncpa [#allocation3], 1
    %s1833 = scalar_lea.sflag [#allocation3], 1
    %1834 = vsyncpa %s1833, 1

</llo_original>
